<compile_context>
chip_gen: v6e
topology: v6e:2x2x1
jax: 0.10.0
libtpu: 0.0.40
codegen_flags: <defaults>
</compile_context>

<pallas_src>
import jax
import jax.numpy as jnp
from jax.experimental import pallas as pl
from jax.experimental.pallas import tpu as pltpu  # noqa: F401  (kept for TPU-specific extensions)

# ---------------- problem sizes (small, consistent with the module) ----------
VOCAB = 20          # num_embeddings (len(weights_matrix))
EMB_DIM = 16        # embedding_dim
HIDDEN = 32         # EP.HIDDEN_DIM
TAGS = 5            # tag_size
BATCH = 2           # N
SEQ = 8             # T
PAD_IDX = 0         # tag2idx['<PAD>']
LANE = 128          # lane-dense output width
NT = BATCH * SEQ    # flattened (time-major) token count


# ---------------- fused Pallas kernel -----------------------------------------
def _fused_net_kernel(idx_ref, emb_ref, w_f_ref, w_b_ref, bias_ref,
                      wlin_ref, blin_ref, logits_ref, seq_ref):
    """Embedding + bidirectional LSTM + linear + argmax in one invocation.

    idx_ref:    (NT, 1)    int32 token ids, t-major (row r = t*N + n -> x[n, t])
    emb_ref:    (VOCAB, E) embedding table
    w_f/w_b:    (E+H, 4H)  per-direction [W_ih^T ; W_hh^T], gate cols [i, f, o, g]
    bias_ref:   (2, 4H)    row 0 = fwd (b_ih+b_hh), row 1 = bwd, same gate order
    wlin_ref:   (2H, LANE) linear weight^T, lane-padded with zeros past TAGS
    blin_ref:   (1, LANE)  linear bias, lane-padded with zeros past TAGS
    logits_ref: (NT, LANE) f32  output; valid logits in [:, :TAGS], t-major rows
    seq_ref:    (NT, LANE) int32 output; argmax broadcast across lanes, t-major rows
    """
    N, T, H = BATCH, SEQ, HIDDEN
    f32 = jnp.float32

    # ---- 1) Embedding lookup as a one-hot matmul (exact row gather, on MXU). ----
    tok = idx_ref[...]                                                    # (NT, 1)
    vocab_ids = jax.lax.broadcasted_iota(jnp.int32, (NT, VOCAB), 1)
    onehot = (tok == vocab_ids).astype(f32)                               # (NT, VOCAB)
    embedded = jnp.dot(onehot, emb_ref[...], preferred_element_type=f32)  # (NT, E)

    # ---- 2) Bidirectional LSTM, fully unrolled; directions share vector work. ---
    w_f = w_f_ref[...]
    w_b = w_b_ref[...]
    # Per-row bias for the stacked (2N, 4H) gates: rows [fwd, fwd, bwd, bwd] (hoisted).
    bias = jnp.concatenate(
        [jnp.broadcast_to(bias_ref[0:1, :], (N, 4 * H)),
         jnp.broadcast_to(bias_ref[1:2, :], (N, 4 * H))], axis=0)         # (2N, 4H)

    h = jnp.zeros((2 * N, H), f32)        # rows 0..N-1: forward, N..2N-1: backward
    c = jnp.zeros((2 * N, H), f32)
    h_fwd = [None] * T
    h_bwd = [None] * T

    for t in range(T):                    # static unroll; T is tiny
        tb = T - 1 - t                    # backward direction consumes reversed time
        x_f = embedded[t * N:(t + 1) * N, :]        # (N, E)
        x_b = embedded[tb * N:(tb + 1) * N, :]      # (N, E)
        z_f = jnp.concatenate([x_f, h[:N, :]], axis=1)     # (N, E+H)
        z_b = jnp.concatenate([x_b, h[N:, :]], axis=1)     # (N, E+H)
        gates = jnp.concatenate(
            [jnp.dot(z_f, w_f, preferred_element_type=f32),
             jnp.dot(z_b, w_b, preferred_element_type=f32)],
            axis=0) + bias                                  # (2N, 4H), order [i, f, o, g]
        sig = jax.nn.sigmoid(gates)                         # one full-width EUP pass
        i_g = sig[:, 0 * H:1 * H]
        f_g = sig[:, 1 * H:2 * H]
        o_g = sig[:, 2 * H:3 * H]
        g_g = jnp.tanh(gates[:, 3 * H:4 * H])
        c = f_g * c + i_g * g_g
        h = o_g * jnp.tanh(c)
        h_fwd[t] = h[:N, :]
        h_bwd[tb] = h[N:, :]              # backward output belongs at time position tb

    # (NT, 2H) hidden slab in t-major row order, [fwd | bwd] along lanes (kept in VMEM/vregs).
    hidden = jnp.concatenate(
        [jnp.concatenate([h_fwd[t], h_bwd[t]], axis=1) for t in range(T)], axis=0)

    # ---- 3) Linear + argmax epilogue, lane-dense outputs. ------------------------
    logits = jnp.dot(hidden, wlin_ref[...], preferred_element_type=f32) + blin_ref[...]
    logits_ref[...] = logits                                              # (NT, LANE), dense store

    lane = jax.lax.broadcasted_iota(jnp.int32, logits.shape, 1)
    valid = lane < TAGS
    masked = jnp.where(valid, logits, jnp.float32(-3.0e38))
    mx = jnp.max(masked, axis=-1, keepdims=True)
    # first-occurrence tie-break (matches torch.argmax / jnp.argmax)
    cand = jnp.where(jnp.logical_and(valid, masked == mx), lane, jnp.int32(LANE))
    seq_col = jnp.min(cand, axis=-1, keepdims=True)                       # (NT, 1) int32
    seq_ref[...] = jnp.broadcast_to(seq_col, seq_ref.shape)               # dense store


def _fused_forward_call(idx_col, emb, w_f, w_b, bias2, wlin, blin):
    """Single-invocation pallas_call: every array is one full block in VMEM."""
    return pl.pallas_call(
        _fused_net_kernel,
        out_shape=(
            jax.ShapeDtypeStruct((NT, LANE), jnp.float32),   # logits slab
            jax.ShapeDtypeStruct((NT, LANE), jnp.int32),     # seq slab
        ),
        in_specs=[
            pl.BlockSpec(idx_col.shape, lambda: (0, 0)),
            pl.BlockSpec(emb.shape, lambda: (0, 0)),
            pl.BlockSpec(w_f.shape, lambda: (0, 0)),
            pl.BlockSpec(w_b.shape, lambda: (0, 0)),
            pl.BlockSpec(bias2.shape, lambda: (0, 0)),
            pl.BlockSpec(wlin.shape, lambda: (0, 0)),
            pl.BlockSpec(blin.shape, lambda: (0, 0)),
        ],
        out_specs=(
            pl.BlockSpec((NT, LANE), lambda: (0, 0)),
            pl.BlockSpec((NT, LANE), lambda: (0, 0)),
        ),
    )(idx_col, emb, w_f, w_b, bias2, wlin, blin)


# ---------------- wrappers ------------------------------------------------------
def pack_params(p):
    """Repack PyTorch-layout weights into the kernel's fused layouts (done once)."""
    H = HIDDEN

    def reorder_gates(m):
        # PyTorch gate blocks along axis 0 are [i, f, g, o]; kernel wants [i, f, o, g].
        i, f, g, o = jnp.split(m, 4, axis=0)
        return jnp.concatenate([i, f, o, g], axis=0)

    def pack_dir(w_ih, w_hh, b_ih, b_hh):
        w = jnp.concatenate(
            [jnp.transpose(reorder_gates(w_ih)),     # (E, 4H)
             jnp.transpose(reorder_gates(w_hh))],    # (H, 4H)
            axis=0)                                  # (E+H, 4H)
        b = reorder_gates((b_ih + b_hh).reshape(4, H)).reshape(1, 4 * H)
        return w.astype(jnp.float32), b.astype(jnp.float32)

    w_f, b_f = pack_dir(p["w_ih_f"], p["w_hh_f"], p["b_ih_f"], p["b_hh_f"])
    w_b, b_b = pack_dir(p["w_ih_b"], p["w_hh_b"], p["b_ih_b"], p["b_hh_b"])

    wlin = jnp.zeros((2 * H, LANE), jnp.float32).at[:, :TAGS].set(jnp.transpose(p["w_lin"]))
    blin = jnp.zeros((1, LANE), jnp.float32).at[:, :TAGS].set(p["b_lin"].reshape(1, TAGS))

    return dict(
        emb=p["emb"].astype(jnp.float32),
        w_f=w_f, w_b=w_b,
        bias=jnp.concatenate([b_f, b_b], axis=0),    # (2, 4H)
        w_lin=wlin, b_lin=blin,
    )


@jax.jit
def net_forward(packed, x, y):
    """Mirror of Net.forward. x, y: (N, T) int32. Returns (logits, y, seq)."""
    N, T = x.shape
    # t-major (row = t*N + n) token-id column for the in-kernel one-hot gather.
    idx_col = jnp.transpose(x).reshape(T * N, 1).astype(jnp.int32)

    logits_slab, seq_slab = _fused_forward_call(
        idx_col, packed["emb"], packed["w_f"], packed["w_b"],
        packed["bias"], packed["w_lin"], packed["b_lin"])

    logits = jnp.transpose(logits_slab[:, :TAGS].reshape(T, N, TAGS), (1, 0, 2))  # (N, T, TAGS)
    seq = seq_slab[:, 0].reshape(T, N)   # already (T, N), like torch.transpose(argmax, 0, 1)
    return logits, y, seq


# ---------------- pure-JAX reference (for self-check) ---------------------------
def reference_forward(params, x, y):
    P = jax.lax.Precision.HIGHEST
    emb = jnp.take(params["emb"], x, axis=0)          # (N, T, E)
    x_tne = jnp.transpose(emb, (1, 0, 2))             # (T, N, E)

    def run_dir(seq_in, w_ih, w_hh, b_ih, b_hh):
        Hh = w_hh.shape[1]
        b = b_ih + b_hh

        def step(carry, x_t):
            h, c = carry
            gates = (jnp.dot(x_t, w_ih.T, precision=P)
                     + jnp.dot(h, w_hh.T, precision=P) + b)
            i = jax.nn.sigmoid(gates[:, :Hh])
            f = jax.nn.sigmoid(gates[:, Hh:2 * Hh])
            g = jnp.tanh(gates[:, 2 * Hh:3 * Hh])
            o = jax.nn.sigmoid(gates[:, 3 * Hh:])
            c = f * c + i * g
            h = o * jnp.tanh(c)
            return (h, c), h

        n = seq_in.shape[1]
        init = (jnp.zeros((n, Hh), jnp.float32), jnp.zeros((n, Hh), jnp.float32))
        _, hs = jax.lax.scan(step, init, seq_in)
        return hs                                      # (T, N, H)

    hf = run_dir(x_tne, params["w_ih_f"], params["w_hh_f"], params["b_ih_f"], params["b_hh_f"])
    hb = run_dir(x_tne[::-1], params["w_ih_b"], params["w_hh_b"],
                 params["b_ih_b"], params["b_hh_b"])[::-1]
    hidden = jnp.transpose(jnp.concatenate([hf, hb], axis=-1), (1, 0, 2))   # (N, T, 2H)
    logits = jnp.dot(hidden, params["w_lin"].T, precision=P) + params["b_lin"]
    seq = jnp.transpose(jnp.argmax(logits, axis=-1), (1, 0))
    return logits, y, seq


# ---------------- deterministic parameter init -----------------------------------
def init_params(key):
    keys = jax.random.split(key, 12)
    k = 1.0 / jnp.sqrt(jnp.float32(HIDDEN))

    def u(rng, shape):
        return jax.random.uniform(rng, shape, jnp.float32, -k, k)

    emb = jax.random.normal(keys[0], (VOCAB, EMB_DIM), jnp.float32)
    emb = emb.at[PAD_IDX].set(0.0)   # padding row (forward-wise just a lookup row)

    return dict(
        emb=emb,
        # forward direction (PyTorch gate order i, f, g, o)
        w_ih_f=u(keys[1], (4 * HIDDEN, EMB_DIM)),
        w_hh_f=u(keys[2], (4 * HIDDEN, HIDDEN)),
        b_ih_f=u(keys[3], (4 * HIDDEN,)),
        b_hh_f=u(keys[4], (4 * HIDDEN,)),
        # backward direction
        w_ih_b=u(keys[5], (4 * HIDDEN, EMB_DIM)),
        w_hh_b=u(keys[6], (4 * HIDDEN, HIDDEN)),
        b_ih_b=u(keys[7], (4 * HIDDEN,)),
        b_hh_b=u(keys[8], (4 * HIDDEN,)),
        # linear: INPUT_SIZE = 2*HIDDEN -> TAGS
        w_lin=u(keys[9], (TAGS, 2 * HIDDEN)),
        b_lin=u(keys[10], (TAGS,)),
    )


if __name__ == "__main__":
    key = jax.random.PRNGKey(0)
    pkey, xkey, ykey = jax.random.split(key, 3)

    params = init_params(pkey)
    packed = pack_params(params)
    x = jax.random.randint(xkey, (BATCH, SEQ), 0, VOCAB, dtype=jnp.int32)
    y = jax.random.randint(ykey, (BATCH, SEQ), 0, TAGS, dtype=jnp.int32)

    logits, y_out, seq = net_forward(packed, x, y)
    jax.block_until_ready((logits, y_out, seq))

    assert logits.shape == (BATCH, SEQ, TAGS)
    assert y_out.shape == (BATCH, SEQ)
    assert seq.shape == (SEQ, BATCH)

    # Self-consistency: in-kernel argmax must match argmax of the kernel's own logits.
    assert jnp.array_equal(seq, jnp.transpose(jnp.argmax(logits, axis=-1), (1, 0)))

    # Numerical check against a pure-JAX reference of the PyTorch module.
    ref_logits, _, _ = reference_forward(params, x, y)
    max_err = float(jnp.max(jnp.abs(logits - ref_logits)))
    assert jnp.allclose(logits, ref_logits, atol=2e-2, rtol=2e-2), max_err

    print("KERNEL_OK")
</pallas_src>

<mosaic_0001>
module attributes {stable_mosaic.version = 11 : i64} {
  func.func @_fused_net_kernel(%arg0: memref<16x1xi32, #tpu.memory_space<vmem>>, %arg1: memref<20x16xf32, #tpu.memory_space<vmem>>, %arg2: memref<48x128xf32, #tpu.memory_space<vmem>>, %arg3: memref<48x128xf32, #tpu.memory_space<vmem>>, %arg4: memref<2x128xf32, #tpu.memory_space<vmem>>, %arg5: memref<64x128xf32, #tpu.memory_space<vmem>>, %arg6: memref<1x128xf32, #tpu.memory_space<vmem>>, %arg7: memref<16x128xf32, #tpu.memory_space<vmem>>, %arg8: memref<16x128xi32, #tpu.memory_space<vmem>>) attributes {dimension_semantics = [], scalar_prefetch = 0 : i64, scratch_operands = 0 : i64, tpu.core_type = #tpu.core_type<tc>} {
    %c0 = arith.constant 0 : index
    %c0_0 = arith.constant 0 : index
    %0 = vector.load %arg0[%c0, %c0_0] : memref<16x1xi32, #tpu.memory_space<vmem>>, vector<16x1xi32>
    %1 = tpu.iota {dimensions = array<i32: 1>} : vector<16x20xi32>
    %2 = vector.broadcast %0 : vector<16x1xi32> to vector<16x20xi32>
    %3 = arith.cmpi eq, %2, %1 : vector<16x20xi32>
    %4 = arith.extui %3 : vector<16x20xi1> to vector<16x20xi32>
    %5 = arith.sitofp %4 : vector<16x20xi32> to vector<16x20xf32>
    %c0_1 = arith.constant 0 : index
    %c0_2 = arith.constant 0 : index
    %6 = vector.load %arg1[%c0_1, %c0_2] : memref<20x16xf32, #tpu.memory_space<vmem>>, vector<20x16xf32>
    %cst = arith.constant dense<0.000000e+00> : vector<16x16xf32>
    %7 = tpu.matmul %5, %6, %cst {dimension_numbers = #tpu.dot_dimension_numbers<[1], [0], [0], [1], [0, 0, 1, 1], [], []>} : vector<16x20xf32>, vector<20x16xf32>, vector<16x16xf32> -> vector<16x16xf32>
    %c0_3 = arith.constant 0 : index
    %c0_4 = arith.constant 0 : index
    %8 = vector.load %arg2[%c0_3, %c0_4] : memref<48x128xf32, #tpu.memory_space<vmem>>, vector<48x128xf32>
    %c0_5 = arith.constant 0 : index
    %c0_6 = arith.constant 0 : index
    %9 = vector.load %arg3[%c0_5, %c0_6] : memref<48x128xf32, #tpu.memory_space<vmem>>, vector<48x128xf32>
    %c0_7 = arith.constant 0 : index
    %c0_8 = arith.constant 0 : index
    %10 = vector.load %arg4[%c0_7, %c0_8] : memref<2x128xf32, #tpu.memory_space<vmem>>, vector<1x128xf32>
    %11 = vector.shape_cast %10 : vector<1x128xf32> to vector<1x128xf32>
    %12 = vector.broadcast %11 : vector<1x128xf32> to vector<2x128xf32>
    %c1 = arith.constant 1 : index
    %c0_9 = arith.constant 0 : index
    %13 = vector.load %arg4[%c1, %c0_9] : memref<2x128xf32, #tpu.memory_space<vmem>>, vector<1x128xf32>
    %14 = vector.shape_cast %13 : vector<1x128xf32> to vector<1x128xf32>
    %15 = vector.broadcast %14 : vector<1x128xf32> to vector<2x128xf32>
    %16 = tpu.concatenate %12, %15 in 0 : vector<2x128xf32>, vector<2x128xf32> -> vector<4x128xf32>
    %cst_10 = arith.constant 0.000000e+00 : f32
    %17 = vector.broadcast %cst_10 : f32 to vector<4x32xf32>
    %cst_11 = arith.constant 0.000000e+00 : f32
    %18 = vector.broadcast %cst_11 : f32 to vector<4x32xf32>
    %19 = vector.extract_strided_slice %7 {offsets = [0, 0], sizes = [2, 16], strides = [1, 1]} : vector<16x16xf32> to vector<2x16xf32>
    %20 = vector.extract_strided_slice %7 {offsets = [14, 0], sizes = [2, 16], strides = [1, 1]} : vector<16x16xf32> to vector<2x16xf32>
    %21 = vector.extract_strided_slice %17 {offsets = [0, 0], sizes = [2, 32], strides = [1, 1]} : vector<4x32xf32> to vector<2x32xf32>
    %22 = tpu.concatenate %19, %21 in 1 : vector<2x16xf32>, vector<2x32xf32> -> vector<2x48xf32>
    %23 = vector.extract_strided_slice %17 {offsets = [2, 0], sizes = [2, 32], strides = [1, 1]} : vector<4x32xf32> to vector<2x32xf32>
    %24 = tpu.concatenate %20, %23 in 1 : vector<2x16xf32>, vector<2x32xf32> -> vector<2x48xf32>
    %cst_12 = arith.constant dense<0.000000e+00> : vector<2x128xf32>
    %25 = tpu.matmul %22, %8, %cst_12 {dimension_numbers = #tpu.dot_dimension_numbers<[1], [0], [0], [1], [0, 0, 1, 1], [], []>} : vector<2x48xf32>, vector<48x128xf32>, vector<2x128xf32> -> vector<2x128xf32>
    %cst_13 = arith.constant dense<0.000000e+00> : vector<2x128xf32>
    %26 = tpu.matmul %24, %9, %cst_13 {dimension_numbers = #tpu.dot_dimension_numbers<[1], [0], [0], [1], [0, 0, 1, 1], [], []>} : vector<2x48xf32>, vector<48x128xf32>, vector<2x128xf32> -> vector<2x128xf32>
    %27 = tpu.concatenate %25, %26 in 0 : vector<2x128xf32>, vector<2x128xf32> -> vector<4x128xf32>
    %28 = arith.addf %27, %16 : vector<4x128xf32>
    %29 = arith.negf %28 : vector<4x128xf32>
    %30 = math.exp %29 : vector<4x128xf32>
    %cst_14 = arith.constant 1.000000e+00 : f32
    %31 = vector.broadcast %cst_14 : f32 to vector<4x128xf32>
    %32 = arith.addf %31, %30 : vector<4x128xf32>
    %33 = arith.divf %31, %32 : vector<4x128xf32>
    %34 = vector.extract_strided_slice %33 {offsets = [0, 0], sizes = [4, 32], strides = [1, 1]} : vector<4x128xf32> to vector<4x32xf32>
    %35 = vector.extract_strided_slice %33 {offsets = [0, 32], sizes = [4, 32], strides = [1, 1]} : vector<4x128xf32> to vector<4x32xf32>
    %36 = vector.extract_strided_slice %33 {offsets = [0, 64], sizes = [4, 32], strides = [1, 1]} : vector<4x128xf32> to vector<4x32xf32>
    %37 = vector.extract_strided_slice %28 {offsets = [0, 96], sizes = [4, 32], strides = [1, 1]} : vector<4x128xf32> to vector<4x32xf32>
    %38 = math.tanh %37 : vector<4x32xf32>
    %39 = arith.mulf %35, %18 : vector<4x32xf32>
    %40 = arith.mulf %34, %38 : vector<4x32xf32>
    %41 = arith.addf %39, %40 : vector<4x32xf32>
    %42 = math.tanh %41 : vector<4x32xf32>
    %43 = arith.mulf %36, %42 : vector<4x32xf32>
    %44 = vector.extract_strided_slice %43 {offsets = [0, 0], sizes = [2, 32], strides = [1, 1]} : vector<4x32xf32> to vector<2x32xf32>
    %45 = vector.extract_strided_slice %43 {offsets = [2, 0], sizes = [2, 32], strides = [1, 1]} : vector<4x32xf32> to vector<2x32xf32>
    %46 = vector.extract_strided_slice %7 {offsets = [2, 0], sizes = [2, 16], strides = [1, 1]} : vector<16x16xf32> to vector<2x16xf32>
    %47 = vector.extract_strided_slice %7 {offsets = [12, 0], sizes = [2, 16], strides = [1, 1]} : vector<16x16xf32> to vector<2x16xf32>
    %48 = vector.extract_strided_slice %43 {offsets = [0, 0], sizes = [2, 32], strides = [1, 1]} : vector<4x32xf32> to vector<2x32xf32>
    %49 = tpu.concatenate %46, %48 in 1 : vector<2x16xf32>, vector<2x32xf32> -> vector<2x48xf32>
    %50 = vector.extract_strided_slice %43 {offsets = [2, 0], sizes = [2, 32], strides = [1, 1]} : vector<4x32xf32> to vector<2x32xf32>
    %51 = tpu.concatenate %47, %50 in 1 : vector<2x16xf32>, vector<2x32xf32> -> vector<2x48xf32>
    %cst_15 = arith.constant dense<0.000000e+00> : vector<2x128xf32>
    %52 = tpu.matmul %49, %8, %cst_15 {dimension_numbers = #tpu.dot_dimension_numbers<[1], [0], [0], [1], [0, 0, 1, 1], [], []>} : vector<2x48xf32>, vector<48x128xf32>, vector<2x128xf32> -> vector<2x128xf32>
    %cst_16 = arith.constant dense<0.000000e+00> : vector<2x128xf32>
    %53 = tpu.matmul %51, %9, %cst_16 {dimension_numbers = #tpu.dot_dimension_numbers<[1], [0], [0], [1], [0, 0, 1, 1], [], []>} : vector<2x48xf32>, vector<48x128xf32>, vector<2x128xf32> -> vector<2x128xf32>
    %54 = tpu.concatenate %52, %53 in 0 : vector<2x128xf32>, vector<2x128xf32> -> vector<4x128xf32>
    %55 = arith.addf %54, %16 : vector<4x128xf32>
    %56 = arith.negf %55 : vector<4x128xf32>
    %57 = math.exp %56 : vector<4x128xf32>
    %cst_17 = arith.constant 1.000000e+00 : f32
    %58 = vector.broadcast %cst_17 : f32 to vector<4x128xf32>
    %59 = arith.addf %58, %57 : vector<4x128xf32>
    %60 = arith.divf %58, %59 : vector<4x128xf32>
    %61 = vector.extract_strided_slice %60 {offsets = [0, 0], sizes = [4, 32], strides = [1, 1]} : vector<4x128xf32> to vector<4x32xf32>
    %62 = vector.extract_strided_slice %60 {offsets = [0, 32], sizes = [4, 32], strides = [1, 1]} : vector<4x128xf32> to vector<4x32xf32>
    %63 = vector.extract_strided_slice %60 {offsets = [0, 64], sizes = [4, 32], strides = [1, 1]} : vector<4x128xf32> to vector<4x32xf32>
    %64 = vector.extract_strided_slice %55 {offsets = [0, 96], sizes = [4, 32], strides = [1, 1]} : vector<4x128xf32> to vector<4x32xf32>
    %65 = math.tanh %64 : vector<4x32xf32>
    %66 = arith.mulf %62, %41 : vector<4x32xf32>
    %67 = arith.mulf %61, %65 : vector<4x32xf32>
    %68 = arith.addf %66, %67 : vector<4x32xf32>
    %69 = math.tanh %68 : vector<4x32xf32>
    %70 = arith.mulf %63, %69 : vector<4x32xf32>
    %71 = vector.extract_strided_slice %70 {offsets = [0, 0], sizes = [2, 32], strides = [1, 1]} : vector<4x32xf32> to vector<2x32xf32>
    %72 = vector.extract_strided_slice %70 {offsets = [2, 0], sizes = [2, 32], strides = [1, 1]} : vector<4x32xf32> to vector<2x32xf32>
    %73 = vector.extract_strided_slice %7 {offsets = [4, 0], sizes = [2, 16], strides = [1, 1]} : vector<16x16xf32> to vector<2x16xf32>
    %74 = vector.extract_strided_slice %7 {offsets = [10, 0], sizes = [2, 16], strides = [1, 1]} : vector<16x16xf32> to vector<2x16xf32>
    %75 = vector.extract_strided_slice %70 {offsets = [0, 0], sizes = [2, 32], strides = [1, 1]} : vector<4x32xf32> to vector<2x32xf32>
    %76 = tpu.concatenate %73, %75 in 1 : vector<2x16xf32>, vector<2x32xf32> -> vector<2x48xf32>
    %77 = vector.extract_strided_slice %70 {offsets = [2, 0], sizes = [2, 32], strides = [1, 1]} : vector<4x32xf32> to vector<2x32xf32>
    %78 = tpu.concatenate %74, %77 in 1 : vector<2x16xf32>, vector<2x32xf32> -> vector<2x48xf32>
    %cst_18 = arith.constant dense<0.000000e+00> : vector<2x128xf32>
    %79 = tpu.matmul %76, %8, %cst_18 {dimension_numbers = #tpu.dot_dimension_numbers<[1], [0], [0], [1], [0, 0, 1, 1], [], []>} : vector<2x48xf32>, vector<48x128xf32>, vector<2x128xf32> -> vector<2x128xf32>
    %cst_19 = arith.constant dense<0.000000e+00> : vector<2x128xf32>
    %80 = tpu.matmul %78, %9, %cst_19 {dimension_numbers = #tpu.dot_dimension_numbers<[1], [0], [0], [1], [0, 0, 1, 1], [], []>} : vector<2x48xf32>, vector<48x128xf32>, vector<2x128xf32> -> vector<2x128xf32>
    %81 = tpu.concatenate %79, %80 in 0 : vector<2x128xf32>, vector<2x128xf32> -> vector<4x128xf32>
    %82 = arith.addf %81, %16 : vector<4x128xf32>
    %83 = arith.negf %82 : vector<4x128xf32>
    %84 = math.exp %83 : vector<4x128xf32>
    %cst_20 = arith.constant 1.000000e+00 : f32
    %85 = vector.broadcast %cst_20 : f32 to vector<4x128xf32>
    %86 = arith.addf %85, %84 : vector<4x128xf32>
    %87 = arith.divf %85, %86 : vector<4x128xf32>
    %88 = vector.extract_strided_slice %87 {offsets = [0, 0], sizes = [4, 32], strides = [1, 1]} : vector<4x128xf32> to vector<4x32xf32>
    %89 = vector.extract_strided_slice %87 {offsets = [0, 32], sizes = [4, 32], strides = [1, 1]} : vector<4x128xf32> to vector<4x32xf32>
    %90 = vector.extract_strided_slice %87 {offsets = [0, 64], sizes = [4, 32], strides = [1, 1]} : vector<4x128xf32> to vector<4x32xf32>
    %91 = vector.extract_strided_slice %82 {offsets = [0, 96], sizes = [4, 32], strides = [1, 1]} : vector<4x128xf32> to vector<4x32xf32>
    %92 = math.tanh %91 : vector<4x32xf32>
    %93 = arith.mulf %89, %68 : vector<4x32xf32>
    %94 = arith.mulf %88, %92 : vector<4x32xf32>
    %95 = arith.addf %93, %94 : vector<4x32xf32>
    %96 = math.tanh %95 : vector<4x32xf32>
    %97 = arith.mulf %90, %96 : vector<4x32xf32>
    %98 = vector.extract_strided_slice %97 {offsets = [0, 0], sizes = [2, 32], strides = [1, 1]} : vector<4x32xf32> to vector<2x32xf32>
    %99 = vector.extract_strided_slice %97 {offsets = [2, 0], sizes = [2, 32], strides = [1, 1]} : vector<4x32xf32> to vector<2x32xf32>
    %100 = vector.extract_strided_slice %7 {offsets = [6, 0], sizes = [2, 16], strides = [1, 1]} : vector<16x16xf32> to vector<2x16xf32>
    %101 = vector.extract_strided_slice %7 {offsets = [8, 0], sizes = [2, 16], strides = [1, 1]} : vector<16x16xf32> to vector<2x16xf32>
    %102 = vector.extract_strided_slice %97 {offsets = [0, 0], sizes = [2, 32], strides = [1, 1]} : vector<4x32xf32> to vector<2x32xf32>
    %103 = tpu.concatenate %100, %102 in 1 : vector<2x16xf32>, vector<2x32xf32> -> vector<2x48xf32>
    %104 = vector.extract_strided_slice %97 {offsets = [2, 0], sizes = [2, 32], strides = [1, 1]} : vector<4x32xf32> to vector<2x32xf32>
    %105 = tpu.concatenate %101, %104 in 1 : vector<2x16xf32>, vector<2x32xf32> -> vector<2x48xf32>
    %cst_21 = arith.constant dense<0.000000e+00> : vector<2x128xf32>
    %106 = tpu.matmul %103, %8, %cst_21 {dimension_numbers = #tpu.dot_dimension_numbers<[1], [0], [0], [1], [0, 0, 1, 1], [], []>} : vector<2x48xf32>, vector<48x128xf32>, vector<2x128xf32> -> vector<2x128xf32>
    %cst_22 = arith.constant dense<0.000000e+00> : vector<2x128xf32>
    %107 = tpu.matmul %105, %9, %cst_22 {dimension_numbers = #tpu.dot_dimension_numbers<[1], [0], [0], [1], [0, 0, 1, 1], [], []>} : vector<2x48xf32>, vector<48x128xf32>, vector<2x128xf32> -> vector<2x128xf32>
    %108 = tpu.concatenate %106, %107 in 0 : vector<2x128xf32>, vector<2x128xf32> -> vector<4x128xf32>
    %109 = arith.addf %108, %16 : vector<4x128xf32>
    %110 = arith.negf %109 : vector<4x128xf32>
    %111 = math.exp %110 : vector<4x128xf32>
    %cst_23 = arith.constant 1.000000e+00 : f32
    %112 = vector.broadcast %cst_23 : f32 to vector<4x128xf32>
    %113 = arith.addf %112, %111 : vector<4x128xf32>
    %114 = arith.divf %112, %113 : vector<4x128xf32>
    %115 = vector.extract_strided_slice %114 {offsets = [0, 0], sizes = [4, 32], strides = [1, 1]} : vector<4x128xf32> to vector<4x32xf32>
    %116 = vector.extract_strided_slice %114 {offsets = [0, 32], sizes = [4, 32], strides = [1, 1]} : vector<4x128xf32> to vector<4x32xf32>
    %117 = vector.extract_strided_slice %114 {offsets = [0, 64], sizes = [4, 32], strides = [1, 1]} : vector<4x128xf32> to vector<4x32xf32>
    %118 = vector.extract_strided_slice %109 {offsets = [0, 96], sizes = [4, 32], strides = [1, 1]} : vector<4x128xf32> to vector<4x32xf32>
    %119 = math.tanh %118 : vector<4x32xf32>
    %120 = arith.mulf %116, %95 : vector<4x32xf32>
    %121 = arith.mulf %115, %119 : vector<4x32xf32>
    %122 = arith.addf %120, %121 : vector<4x32xf32>
    %123 = math.tanh %122 : vector<4x32xf32>
    %124 = arith.mulf %117, %123 : vector<4x32xf32>
    %125 = vector.extract_strided_slice %124 {offsets = [0, 0], sizes = [2, 32], strides = [1, 1]} : vector<4x32xf32> to vector<2x32xf32>
    %126 = vector.extract_strided_slice %124 {offsets = [2, 0], sizes = [2, 32], strides = [1, 1]} : vector<4x32xf32> to vector<2x32xf32>
    %127 = vector.extract_strided_slice %7 {offsets = [8, 0], sizes = [2, 16], strides = [1, 1]} : vector<16x16xf32> to vector<2x16xf32>
    %128 = vector.extract_strided_slice %7 {offsets = [6, 0], sizes = [2, 16], strides = [1, 1]} : vector<16x16xf32> to vector<2x16xf32>
    %129 = vector.extract_strided_slice %124 {offsets = [0, 0], sizes = [2, 32], strides = [1, 1]} : vector<4x32xf32> to vector<2x32xf32>
    %130 = tpu.concatenate %127, %129 in 1 : vector<2x16xf32>, vector<2x32xf32> -> vector<2x48xf32>
    %131 = vector.extract_strided_slice %124 {offsets = [2, 0], sizes = [2, 32], strides = [1, 1]} : vector<4x32xf32> to vector<2x32xf32>
    %132 = tpu.concatenate %128, %131 in 1 : vector<2x16xf32>, vector<2x32xf32> -> vector<2x48xf32>
    %cst_24 = arith.constant dense<0.000000e+00> : vector<2x128xf32>
    %133 = tpu.matmul %130, %8, %cst_24 {dimension_numbers = #tpu.dot_dimension_numbers<[1], [0], [0], [1], [0, 0, 1, 1], [], []>} : vector<2x48xf32>, vector<48x128xf32>, vector<2x128xf32> -> vector<2x128xf32>
    %cst_25 = arith.constant dense<0.000000e+00> : vector<2x128xf32>
    %134 = tpu.matmul %132, %9, %cst_25 {dimension_numbers = #tpu.dot_dimension_numbers<[1], [0], [0], [1], [0, 0, 1, 1], [], []>} : vector<2x48xf32>, vector<48x128xf32>, vector<2x128xf32> -> vector<2x128xf32>
    %135 = tpu.concatenate %133, %134 in 0 : vector<2x128xf32>, vector<2x128xf32> -> vector<4x128xf32>
    %136 = arith.addf %135, %16 : vector<4x128xf32>
    %137 = arith.negf %136 : vector<4x128xf32>
    %138 = math.exp %137 : vector<4x128xf32>
    %cst_26 = arith.constant 1.000000e+00 : f32
    %139 = vector.broadcast %cst_26 : f32 to vector<4x128xf32>
    %140 = arith.addf %139, %138 : vector<4x128xf32>
    %141 = arith.divf %139, %140 : vector<4x128xf32>
    %142 = vector.extract_strided_slice %141 {offsets = [0, 0], sizes = [4, 32], strides = [1, 1]} : vector<4x128xf32> to vector<4x32xf32>
    %143 = vector.extract_strided_slice %141 {offsets = [0, 32], sizes = [4, 32], strides = [1, 1]} : vector<4x128xf32> to vector<4x32xf32>
    %144 = vector.extract_strided_slice %141 {offsets = [0, 64], sizes = [4, 32], strides = [1, 1]} : vector<4x128xf32> to vector<4x32xf32>
    %145 = vector.extract_strided_slice %136 {offsets = [0, 96], sizes = [4, 32], strides = [1, 1]} : vector<4x128xf32> to vector<4x32xf32>
    %146 = math.tanh %145 : vector<4x32xf32>
    %147 = arith.mulf %143, %122 : vector<4x32xf32>
    %148 = arith.mulf %142, %146 : vector<4x32xf32>
    %149 = arith.addf %147, %148 : vector<4x32xf32>
    %150 = math.tanh %149 : vector<4x32xf32>
    %151 = arith.mulf %144, %150 : vector<4x32xf32>
    %152 = vector.extract_strided_slice %151 {offsets = [0, 0], sizes = [2, 32], strides = [1, 1]} : vector<4x32xf32> to vector<2x32xf32>
    %153 = vector.extract_strided_slice %151 {offsets = [2, 0], sizes = [2, 32], strides = [1, 1]} : vector<4x32xf32> to vector<2x32xf32>
    %154 = vector.extract_strided_slice %7 {offsets = [10, 0], sizes = [2, 16], strides = [1, 1]} : vector<16x16xf32> to vector<2x16xf32>
    %155 = vector.extract_strided_slice %7 {offsets = [4, 0], sizes = [2, 16], strides = [1, 1]} : vector<16x16xf32> to vector<2x16xf32>
    %156 = vector.extract_strided_slice %151 {offsets = [0, 0], sizes = [2, 32], strides = [1, 1]} : vector<4x32xf32> to vector<2x32xf32>
    %157 = tpu.concatenate %154, %156 in 1 : vector<2x16xf32>, vector<2x32xf32> -> vector<2x48xf32>
    %158 = vector.extract_strided_slice %151 {offsets = [2, 0], sizes = [2, 32], strides = [1, 1]} : vector<4x32xf32> to vector<2x32xf32>
    %159 = tpu.concatenate %155, %158 in 1 : vector<2x16xf32>, vector<2x32xf32> -> vector<2x48xf32>
    %cst_27 = arith.constant dense<0.000000e+00> : vector<2x128xf32>
    %160 = tpu.matmul %157, %8, %cst_27 {dimension_numbers = #tpu.dot_dimension_numbers<[1], [0], [0], [1], [0, 0, 1, 1], [], []>} : vector<2x48xf32>, vector<48x128xf32>, vector<2x128xf32> -> vector<2x128xf32>
    %cst_28 = arith.constant dense<0.000000e+00> : vector<2x128xf32>
    %161 = tpu.matmul %159, %9, %cst_28 {dimension_numbers = #tpu.dot_dimension_numbers<[1], [0], [0], [1], [0, 0, 1, 1], [], []>} : vector<2x48xf32>, vector<48x128xf32>, vector<2x128xf32> -> vector<2x128xf32>
    %162 = tpu.concatenate %160, %161 in 0 : vector<2x128xf32>, vector<2x128xf32> -> vector<4x128xf32>
    %163 = arith.addf %162, %16 : vector<4x128xf32>
    %164 = arith.negf %163 : vector<4x128xf32>
    %165 = math.exp %164 : vector<4x128xf32>
    %cst_29 = arith.constant 1.000000e+00 : f32
    %166 = vector.broadcast %cst_29 : f32 to vector<4x128xf32>
    %167 = arith.addf %166, %165 : vector<4x128xf32>
    %168 = arith.divf %166, %167 : vector<4x128xf32>
    %169 = vector.extract_strided_slice %168 {offsets = [0, 0], sizes = [4, 32], strides = [1, 1]} : vector<4x128xf32> to vector<4x32xf32>
    %170 = vector.extract_strided_slice %168 {offsets = [0, 32], sizes = [4, 32], strides = [1, 1]} : vector<4x128xf32> to vector<4x32xf32>
    %171 = vector.extract_strided_slice %168 {offsets = [0, 64], sizes = [4, 32], strides = [1, 1]} : vector<4x128xf32> to vector<4x32xf32>
    %172 = vector.extract_strided_slice %163 {offsets = [0, 96], sizes = [4, 32], strides = [1, 1]} : vector<4x128xf32> to vector<4x32xf32>
    %173 = math.tanh %172 : vector<4x32xf32>
    %174 = arith.mulf %170, %149 : vector<4x32xf32>
    %175 = arith.mulf %169, %173 : vector<4x32xf32>
    %176 = arith.addf %174, %175 : vector<4x32xf32>
    %177 = math.tanh %176 : vector<4x32xf32>
    %178 = arith.mulf %171, %177 : vector<4x32xf32>
    %179 = vector.extract_strided_slice %178 {offsets = [0, 0], sizes = [2, 32], strides = [1, 1]} : vector<4x32xf32> to vector<2x32xf32>
    %180 = vector.extract_strided_slice %178 {offsets = [2, 0], sizes = [2, 32], strides = [1, 1]} : vector<4x32xf32> to vector<2x32xf32>
    %181 = vector.extract_strided_slice %7 {offsets = [12, 0], sizes = [2, 16], strides = [1, 1]} : vector<16x16xf32> to vector<2x16xf32>
    %182 = vector.extract_strided_slice %7 {offsets = [2, 0], sizes = [2, 16], strides = [1, 1]} : vector<16x16xf32> to vector<2x16xf32>
    %183 = vector.extract_strided_slice %178 {offsets = [0, 0], sizes = [2, 32], strides = [1, 1]} : vector<4x32xf32> to vector<2x32xf32>
    %184 = tpu.concatenate %181, %183 in 1 : vector<2x16xf32>, vector<2x32xf32> -> vector<2x48xf32>
    %185 = vector.extract_strided_slice %178 {offsets = [2, 0], sizes = [2, 32], strides = [1, 1]} : vector<4x32xf32> to vector<2x32xf32>
    %186 = tpu.concatenate %182, %185 in 1 : vector<2x16xf32>, vector<2x32xf32> -> vector<2x48xf32>
    %cst_30 = arith.constant dense<0.000000e+00> : vector<2x128xf32>
    %187 = tpu.matmul %184, %8, %cst_30 {dimension_numbers = #tpu.dot_dimension_numbers<[1], [0], [0], [1], [0, 0, 1, 1], [], []>} : vector<2x48xf32>, vector<48x128xf32>, vector<2x128xf32> -> vector<2x128xf32>
    %cst_31 = arith.constant dense<0.000000e+00> : vector<2x128xf32>
    %188 = tpu.matmul %186, %9, %cst_31 {dimension_numbers = #tpu.dot_dimension_numbers<[1], [0], [0], [1], [0, 0, 1, 1], [], []>} : vector<2x48xf32>, vector<48x128xf32>, vector<2x128xf32> -> vector<2x128xf32>
    %189 = tpu.concatenate %187, %188 in 0 : vector<2x128xf32>, vector<2x128xf32> -> vector<4x128xf32>
    %190 = arith.addf %189, %16 : vector<4x128xf32>
    %191 = arith.negf %190 : vector<4x128xf32>
    %192 = math.exp %191 : vector<4x128xf32>
    %cst_32 = arith.constant 1.000000e+00 : f32
    %193 = vector.broadcast %cst_32 : f32 to vector<4x128xf32>
    %194 = arith.addf %193, %192 : vector<4x128xf32>
    %195 = arith.divf %193, %194 : vector<4x128xf32>
    %196 = vector.extract_strided_slice %195 {offsets = [0, 0], sizes = [4, 32], strides = [1, 1]} : vector<4x128xf32> to vector<4x32xf32>
    %197 = vector.extract_strided_slice %195 {offsets = [0, 32], sizes = [4, 32], strides = [1, 1]} : vector<4x128xf32> to vector<4x32xf32>
    %198 = vector.extract_strided_slice %195 {offsets = [0, 64], sizes = [4, 32], strides = [1, 1]} : vector<4x128xf32> to vector<4x32xf32>
    %199 = vector.extract_strided_slice %190 {offsets = [0, 96], sizes = [4, 32], strides = [1, 1]} : vector<4x128xf32> to vector<4x32xf32>
    %200 = math.tanh %199 : vector<4x32xf32>
    %201 = arith.mulf %197, %176 : vector<4x32xf32>
    %202 = arith.mulf %196, %200 : vector<4x32xf32>
    %203 = arith.addf %201, %202 : vector<4x32xf32>
    %204 = math.tanh %203 : vector<4x32xf32>
    %205 = arith.mulf %198, %204 : vector<4x32xf32>
    %206 = vector.extract_strided_slice %205 {offsets = [0, 0], sizes = [2, 32], strides = [1, 1]} : vector<4x32xf32> to vector<2x32xf32>
    %207 = vector.extract_strided_slice %205 {offsets = [2, 0], sizes = [2, 32], strides = [1, 1]} : vector<4x32xf32> to vector<2x32xf32>
    %208 = vector.extract_strided_slice %7 {offsets = [14, 0], sizes = [2, 16], strides = [1, 1]} : vector<16x16xf32> to vector<2x16xf32>
    %209 = vector.extract_strided_slice %7 {offsets = [0, 0], sizes = [2, 16], strides = [1, 1]} : vector<16x16xf32> to vector<2x16xf32>
    %210 = vector.extract_strided_slice %205 {offsets = [0, 0], sizes = [2, 32], strides = [1, 1]} : vector<4x32xf32> to vector<2x32xf32>
    %211 = tpu.concatenate %208, %210 in 1 : vector<2x16xf32>, vector<2x32xf32> -> vector<2x48xf32>
    %212 = vector.extract_strided_slice %205 {offsets = [2, 0], sizes = [2, 32], strides = [1, 1]} : vector<4x32xf32> to vector<2x32xf32>
    %213 = tpu.concatenate %209, %212 in 1 : vector<2x16xf32>, vector<2x32xf32> -> vector<2x48xf32>
    %cst_33 = arith.constant dense<0.000000e+00> : vector<2x128xf32>
    %214 = tpu.matmul %211, %8, %cst_33 {dimension_numbers = #tpu.dot_dimension_numbers<[1], [0], [0], [1], [0, 0, 1, 1], [], []>} : vector<2x48xf32>, vector<48x128xf32>, vector<2x128xf32> -> vector<2x128xf32>
    %cst_34 = arith.constant dense<0.000000e+00> : vector<2x128xf32>
    %215 = tpu.matmul %213, %9, %cst_34 {dimension_numbers = #tpu.dot_dimension_numbers<[1], [0], [0], [1], [0, 0, 1, 1], [], []>} : vector<2x48xf32>, vector<48x128xf32>, vector<2x128xf32> -> vector<2x128xf32>
    %216 = tpu.concatenate %214, %215 in 0 : vector<2x128xf32>, vector<2x128xf32> -> vector<4x128xf32>
    %217 = arith.addf %216, %16 : vector<4x128xf32>
    %218 = arith.negf %217 : vector<4x128xf32>
    %219 = math.exp %218 : vector<4x128xf32>
    %cst_35 = arith.constant 1.000000e+00 : f32
    %220 = vector.broadcast %cst_35 : f32 to vector<4x128xf32>
    %221 = arith.addf %220, %219 : vector<4x128xf32>
    %222 = arith.divf %220, %221 : vector<4x128xf32>
    %223 = vector.extract_strided_slice %222 {offsets = [0, 0], sizes = [4, 32], strides = [1, 1]} : vector<4x128xf32> to vector<4x32xf32>
    %224 = vector.extract_strided_slice %222 {offsets = [0, 32], sizes = [4, 32], strides = [1, 1]} : vector<4x128xf32> to vector<4x32xf32>
    %225 = vector.extract_strided_slice %222 {offsets = [0, 64], sizes = [4, 32], strides = [1, 1]} : vector<4x128xf32> to vector<4x32xf32>
    %226 = vector.extract_strided_slice %217 {offsets = [0, 96], sizes = [4, 32], strides = [1, 1]} : vector<4x128xf32> to vector<4x32xf32>
    %227 = math.tanh %226 : vector<4x32xf32>
    %228 = arith.mulf %224, %203 : vector<4x32xf32>
    %229 = arith.mulf %223, %227 : vector<4x32xf32>
    %230 = arith.addf %228, %229 : vector<4x32xf32>
    %231 = math.tanh %230 : vector<4x32xf32>
    %232 = arith.mulf %225, %231 : vector<4x32xf32>
    %233 = vector.extract_strided_slice %232 {offsets = [0, 0], sizes = [2, 32], strides = [1, 1]} : vector<4x32xf32> to vector<2x32xf32>
    %234 = vector.extract_strided_slice %232 {offsets = [2, 0], sizes = [2, 32], strides = [1, 1]} : vector<4x32xf32> to vector<2x32xf32>
    %235 = tpu.concatenate %44, %234 in 1 : vector<2x32xf32>, vector<2x32xf32> -> vector<2x64xf32>
    %236 = tpu.concatenate %71, %207 in 1 : vector<2x32xf32>, vector<2x32xf32> -> vector<2x64xf32>
    %237 = tpu.concatenate %98, %180 in 1 : vector<2x32xf32>, vector<2x32xf32> -> vector<2x64xf32>
    %238 = tpu.concatenate %125, %153 in 1 : vector<2x32xf32>, vector<2x32xf32> -> vector<2x64xf32>
    %239 = tpu.concatenate %152, %126 in 1 : vector<2x32xf32>, vector<2x32xf32> -> vector<2x64xf32>
    %240 = tpu.concatenate %179, %99 in 1 : vector<2x32xf32>, vector<2x32xf32> -> vector<2x64xf32>
    %241 = tpu.concatenate %206, %72 in 1 : vector<2x32xf32>, vector<2x32xf32> -> vector<2x64xf32>
    %242 = tpu.concatenate %233, %45 in 1 : vector<2x32xf32>, vector<2x32xf32> -> vector<2x64xf32>
    %243 = tpu.concatenate %235, %236, %237, %238, %239, %240, %241, %242 in 0 : vector<2x64xf32>, vector<2x64xf32>, vector<2x64xf32>, vector<2x64xf32>, vector<2x64xf32>, vector<2x64xf32>, vector<2x64xf32>, vector<2x64xf32> -> vector<16x64xf32>
    %c0_36 = arith.constant 0 : index
    %c0_37 = arith.constant 0 : index
    %244 = vector.load %arg5[%c0_36, %c0_37] : memref<64x128xf32, #tpu.memory_space<vmem>>, vector<64x128xf32>
    %cst_38 = arith.constant dense<0.000000e+00> : vector<16x128xf32>
    %245 = tpu.matmul %243, %244, %cst_38 {dimension_numbers = #tpu.dot_dimension_numbers<[1], [0], [0], [1], [0, 0, 1, 1], [], []>} : vector<16x64xf32>, vector<64x128xf32>, vector<16x128xf32> -> vector<16x128xf32>
    %c0_39 = arith.constant 0 : index
    %c0_40 = arith.constant 0 : index
    %246 = vector.load %arg6[%c0_39, %c0_40] : memref<1x128xf32, #tpu.memory_space<vmem>>, vector<1x128xf32>
    %247 = vector.broadcast %246 : vector<1x128xf32> to vector<16x128xf32>
    %248 = arith.addf %245, %247 : vector<16x128xf32>
    %c0_41 = arith.constant 0 : index
    %c0_42 = arith.constant 0 : index
    %249 = vector.load %arg7[%c0_41, %c0_42] : memref<16x128xf32, #tpu.memory_space<vmem>>, vector<16x128xf32>
    tpu.vector_store %arg7[%c0_41, %c0_42], %248 {strides = array<i32>} : memref<16x128xf32, #tpu.memory_space<vmem>>, vector<16x128xf32>,
    %250 = tpu.iota {dimensions = array<i32: 1>} : vector<16x128xi32>
    %c5_i32 = arith.constant 5 : i32
    %251 = vector.broadcast %c5_i32 : i32 to vector<16x128xi32>
    %252 = arith.cmpi slt, %250, %251 : vector<16x128xi32>
    %cst_43 = arith.constant -3.000000e+38 : f32
    %253 = vector.broadcast %cst_43 : f32 to vector<16x128xf32>
    %254 = arith.select %252, %248, %253 : vector<16x128xi1>, vector<16x128xf32>
    %cst_44 = arith.constant dense<0xFF800000> : vector<16xf32>
    %255 = vector.multi_reduction <maximumf>, %254, %cst_44 [1] : vector<16x128xf32> to vector<16xf32>
    %256 = vector.shape_cast %255 : vector<16xf32> to vector<16x1xf32>
    %257 = vector.broadcast %256 : vector<16x1xf32> to vector<16x128xf32>
    %258 = arith.cmpf oeq, %254, %257 : vector<16x128xf32>
    %259 = arith.andi %252, %258 : vector<16x128xi1>
    %c128_i32 = arith.constant 128 : i32
    %260 = vector.broadcast %c128_i32 : i32 to vector<16x128xi32>
    %261 = arith.select %259, %250, %260 : vector<16x128xi1>, vector<16x128xi32>
    %cst_45 = arith.constant dense<2147483647> : vector<16xi32>
    %262 = vector.multi_reduction <minsi>, %261, %cst_45 [1] : vector<16x128xi32> to vector<16xi32>
    %263 = vector.shape_cast %262 : vector<16xi32> to vector<16x1xi32>
    %264 = vector.shape_cast %263 : vector<16x1xi32> to vector<16x1xi32>
    %265 = vector.broadcast %264 : vector<16x1xi32> to vector<16x128xi32>
    %c0_46 = arith.constant 0 : index
    %c0_47 = arith.constant 0 : index
    %266 = vector.load %arg8[%c0_46, %c0_47] : memref<16x128xi32, #tpu.memory_space<vmem>>, vector<16x128xi32>
    tpu.vector_store %arg8[%c0_46, %c0_47], %265 {strides = array<i32>} : memref<16x128xi32, #tpu.memory_space<vmem>>, vector<16x128xi32>,
    return
  }
}

</mosaic_0001>

<llo_original>
// kernel: squeeze.1
$region0: #{squeeze.1}
  %s0 = inlined_call_operand.vmem [shape: s32[16], index: 0, kind: input, shape index: {}]
  %s1 = inlined_call_operand.vmem [shape: s32[8,2], index: 1, kind: output, shape index: {}]
  $region1: #{squeeze.1} parent=0
    #allocation0 [shape = 'u8[4096]{0}', space=vmem, size = 0x1000, scoped, tag = 'scoped mem for input reshape']
    %s3 = sshll.u32 1, 1
    %s4 = ssub.s32 %s3, 1
    %v5 = vld [vmem:[%s0] sm:%s4]
    %6 = vst [vmem:[#allocation0] sm:%s4] %v5
    %v7 = vld [vmem:[#allocation0] sm:$0x1]
    %vm8 = vcmask 15360
    %9 = vst.msk [vmem:[%s1] sm:$0x1] %vm8, %v7
    %v10 = vld [vmem:[#allocation0] sm:$0x1]
    %11 = vrot.lane.b32.xlu0 %v10, 126
    %v12 = vpop.permute.xlu0 %11
    %vm13 = vcmask 15360
    %s14 = scalar_lea.vmem %s1, 1
    %15 = vst.msk [vmem:[%s14] sm:$0x1] %vm13, %v12
    %v16 = vld [vmem:[#allocation0] sm:$0x1]
    %17 = vrot.lane.b32.xlu0 %v16, 124
    %v18 = vpop.permute.xlu0 %17
    %vm19 = vcmask 15360
    %s20 = scalar_lea.vmem %s1, 2
    %21 = vst.msk [vmem:[%s20] sm:$0x1] %vm19, %v18
    %v22 = vld [vmem:[#allocation0] sm:$0x1]
    %23 = vrot.lane.b32.xlu0 %v22, 122
    %v24 = vpop.permute.xlu0 %23
    %vm25 = vcmask 15360
    %s26 = scalar_lea.vmem %s1, 3
    %27 = vst.msk [vmem:[%s26] sm:$0x1] %vm25, %v24
    %v28 = vld [vmem:[#allocation0] sm:$0x1]
    %29 = vrot.lane.b32.xlu0 %v28, 120
    %v30 = vpop.permute.xlu0 %29
    %vm31 = vcmask 15360
    %s32 = scalar_lea.vmem %s1, 4
    %33 = vst.msk [vmem:[%s32] sm:$0x1] %vm31, %v30
    %v34 = vld [vmem:[#allocation0] sm:$0x1]
    %35 = vrot.lane.b32.xlu0 %v34, 118
    %v36 = vpop.permute.xlu0 %35
    %vm37 = vcmask 15360
    %s38 = scalar_lea.vmem %s1, 5
    %39 = vst.msk [vmem:[%s38] sm:$0x1] %vm37, %v36
    %v40 = vld [vmem:[#allocation0] sm:$0x1]
    %41 = vrot.lane.b32.xlu0 %v40, 116
    %v42 = vpop.permute.xlu0 %41
    %vm43 = vcmask 15360
    %s44 = scalar_lea.vmem %s1, 6
    %45 = vst.msk [vmem:[%s44] sm:$0x1] %vm43, %v42
    %v46 = vld [vmem:[#allocation0] sm:$0x1]
    %47 = vrot.lane.b32.xlu0 %v46, 114
    %v48 = vpop.permute.xlu0 %47
    %vm49 = vcmask 15360
    %s50 = scalar_lea.vmem %s1, 7
    %51 = vst.msk [vmem:[%s50] sm:$0x1] %vm49, %v48

// kernel: net_forward.1
$region0: #{net_forward.1}
  #allocation0 [shape = 'u32[]', space=smem, size = 0x4, offset = 0x4, fixed_abs, tag = 'smem constant byte address 0x4 - core index']
  #allocation1 [shape = 'u32[144,128]{1,0:T(1,128)}', space=vmem, size = 0x12000, scoped, tag = 'internal scratch']
  %s0 = inlined_call_operand.vmem [shape: s32[16,1], index: 0, kind: input, shape index: {}]
  %s1 = inlined_call_operand.vmem [shape: f32[20,16], index: 1, kind: input, shape index: {}]
  %s2 = inlined_call_operand.hbm [shape: f32[48,128], index: 2, kind: input, shape index: {}]
  %s3 = inlined_call_operand.hbm [shape: f32[48,128], index: 3, kind: input, shape index: {}]
  %s4 = inlined_call_operand.vmem [shape: f32[2,128], index: 4, kind: input, shape index: {}]
  %s5 = inlined_call_operand.vmem [shape: f32[64,128], index: 5, kind: input, shape index: {}]
  %s6 = inlined_call_operand.vmem [shape: f32[1,128], index: 6, kind: input, shape index: {}]
  %s7 = inlined_call_operand.vmem [shape: f32[16,128], index: 7, kind: output, shape index: {0}]
  %s8 = inlined_call_operand.vmem [shape: s32[16,128], index: 8, kind: output, shape index: {1}]
  %9 = xla_tuple %s7, %s8
  %s10 = sld [smem:[#allocation0]]
  $region54: #{net_forward.1} parent=0
    _
  %s12 = ssub.s32 1, %s10
  %s13 = scalar_select 0, %s12, %s10
  $region1: #{net_forward.1} parent=0
    #allocation2 [shape = 'u8[24576]{0}', space=vmem, size = 0x6000, scoped, tag = 'input window, operand 2, single buffered']
    #allocation3 [shape = 's32[1]{0}', space=sflag, size = 0x4, scoped, tag = 'scoped memory for net_forward.1']
    #allocation4 [shape = 'u8[24576]{0}', space=vmem, size = 0x6000, scoped, tag = 'input window, operand 3, single buffered']
    #allocation5 [shape = 's32[1]{0}', space=sflag, size = 0x4, scoped, tag = 'scoped memory for net_forward.1']
    %14 = vsyncpa [#allocation3], 0
    %15 = vsyncpa [#allocation5], 0
    // Predicated region
    $region2: #{net_forward.1} parent=1 // pred_check
      _
    $region3: #{net_forward.1} parent=1 // pred_check_branch
      %17 = sbr.rel (0) target = $region5
    $region4: #{net_forward.1} parent=1 // pred_region
      _
    $region5: #{net_forward.1} parent=1 // pred_fallthru
      _
    // Predicated region
    $region6: #{net_forward.1} parent=1 // pred_check
      _
    $region7: #{net_forward.1} parent=1 // pred_check_branch
      %19 = sbr.rel (0) target = $region9
    $region8: #{net_forward.1} parent=1 // pred_region
      _
    $region9: #{net_forward.1} parent=1 // pred_fallthru
      _
    // Predicated region
    $region10: #{net_forward.1} parent=1 // pred_check
      _
    $region11: #{net_forward.1} parent=1 // pred_check_branch
      %21 = sbr.rel (0) target = $region13
    $region12: #{net_forward.1} parent=1 // pred_region
      %s23 = ssub.s32 768, 768
      %24 = vsyncadd [#allocation3], %s23
      %s25 = sshll.u32 [#allocation2], 4
      %s26 = int_to_ptr.vmem [resolvable:$true] %s25
      %31 = dma.hbm_to_vmem [thread:$0]  %s2, 768, %s26, [#allocation3], 128, 128, 8
    $region13: #{net_forward.1} parent=1 // pred_fallthru
      _
    // Predicated region
    $region14: #{net_forward.1} parent=1 // pred_check
      _
    $region15: #{net_forward.1} parent=1 // pred_check_branch
      %33 = sbr.rel (0) target = $region17
    $region16: #{net_forward.1} parent=1 // pred_region
      %s35 = ssub.s32 768, 768
      %36 = vsyncadd [#allocation5], %s35
      %s37 = sshll.u32 [#allocation4], 4
      %s38 = int_to_ptr.vmem [resolvable:$true] %s37
      %43 = dma.hbm_to_vmem [thread:$0]  %s3, 768, %s38, [#allocation5], 128, 128, 8
    $region17: #{net_forward.1} parent=1 // pred_fallthru
      _
    // Predicated region
    $region18: #{net_forward.1} parent=1 // pred_check
      _
    $region19: #{net_forward.1} parent=1 // pred_check_branch
      %45 = sbr.rel (0) target = $region21
    $region20: #{net_forward.1} parent=1 // pred_region
      _
    $region21: #{net_forward.1} parent=1 // pred_fallthru
      _
    // Predicated region
    $region22: #{net_forward.1} parent=1 // pred_check
      _
    $region23: #{net_forward.1} parent=1 // pred_check_branch
      %47 = sbr.rel (0) target = $region25
    $region24: #{net_forward.1} parent=1 // pred_region
      _
    $region25: #{net_forward.1} parent=1 // pred_fallthru
      _
    // Predicated region
    $region26: #{net_forward.1} parent=1 // pred_check
      _
    $region27: #{net_forward.1} parent=1 // pred_check_branch
      %49 = sbr.rel (0) target = $region29
    $region28: #{net_forward.1} parent=1 // pred_region
      _
    $region29: #{net_forward.1} parent=1 // pred_fallthru
      _
    // Predicated region
    $region30: #{net_forward.1} parent=1 // pred_check
      _
    $region31: #{net_forward.1} parent=1 // pred_check_branch
      %51 = sbr.rel (0) target = $region33
    $region32: #{net_forward.1} parent=1 // pred_region
      %52 = dma.done [#allocation3], 768
    $region33: #{net_forward.1} parent=1 // pred_fallthru
      _
    // Predicated region
    $region34: #{net_forward.1} parent=1 // pred_check
      _
    $region35: #{net_forward.1} parent=1 // pred_check_branch
      %54 = sbr.rel (0) target = $region37
    $region36: #{net_forward.1} parent=1 // pred_region
      %55 = dma.done [#allocation5], 768
    $region37: #{net_forward.1} parent=1 // pred_fallthru
      _
    %v56 = vld [vmem:[%s0] sm:$0xff]
    %v57 = vld [vmem:[%s0 + $0x8] sm:$0xff]
    %v58 = vlaneseq
    %v59 = vand.u32 %v58, 127
    %60 = vset.pattern.permute.xlu0 0
    %61 = vperm.xlu0 %60, %v56
    %v62 = vpop.permute.xlu0 %61
    %63 = vset.pattern.permute.xlu0 0
    %64 = vperm.xlu0 %63, %v57
    %v65 = vpop.permute.xlu0 %64
    %vm66 = vcmp.eq.s32.totalorder %v62, %v59
    %vm67 = vcmp.eq.s32.totalorder %v65, %v59
    %v68 = vsel %vm66, 1, 0
    %v69 = vsel %vm67, 1, 0
    %v70 = vcvt.s32.f32 %v68
    %v71 = vcvt.s32.f32 %v69
    %v72 = vld [vmem:[%s1] sm:$0xff]
    %v73 = vld [vmem:[%s1 + $0x8] sm:$0xff]
    %v74 = vld [vmem:[%s1 + $0x10] sm:$0xf]
    %vm75 = vcmask 162816
    %v77 = vsel %vm75, %v70, 0
    %v80 = vsel %vm75, %v71, 0
    %vm82 = vcmask 1043456
    %v84 = vsel %vm82, %v74, 0
    %86 = vmatprep.subr.mxu0 0.0
    %87 = vmatpush1.msra.mxu0 0.0
    %88 = vmatprep.subr.mxu0 0.0
    %89 = vmatpush1.msra.mxu0 0.0
    %90 = vmatprep.subr.mxu0 0.0
    %91 = vmatpush1.msra.mxu0 0.0
    %92 = vmatprep.subr.mxu0 0.0
    %93 = vmatpush1.msra.mxu0 0.0
    %94 = vmatprep.subr.mxu0 0.0
    %95 = vmatpush1.msra.mxu0 0.0
    %96 = vmatprep.subr.mxu0 0.0
    %97 = vmatpush1.msra.mxu0 0.0
    %98 = vmatprep.subr.mxu0 0.0
    %99 = vmatpush1.msra.mxu0 0.0
    %100 = vmatprep.subr.mxu0 0.0
    %101 = vmatpush1.msra.mxu0 0.0
    %102 = vmatprep.subr.mxu0 0.0
    %103 = vmatpush1.msra.mxu0 0.0
    %104 = vmatprep.subr.mxu0 0.0
    %105 = vmatpush1.msra.mxu0 0.0
    %106 = vmatprep.subr.mxu0 0.0
    %107 = vmatpush1.msra.mxu0 0.0
    %108 = vmatprep.subr.mxu0 0.0
    %109 = vmatpush1.msra.mxu0 0.0
    %110 = vmatprep.subr.mxu0 0.0
    %111 = vmatpush1.msra.mxu0 0.0
    %112 = vmatprep.subr.mxu0 0.0
    %113 = vmatpush1.msra.mxu0 %v84
    %114 = vmatprep.subr.mxu0 0.0
    %115 = vmatpush1.msra.mxu0 %v73
    %116 = vmatprep.subr.mxu0 0.0
    %117 = vmatpush1.msra.mxu0 %v72
    %118 = vmatprep.subr.mxu0 0.0
    %119 = vmatpush2.msra.mxu0 0.0
    %120 = vmatprep.subr.mxu0 0.0
    %121 = vmatpush2.msra.mxu0 0.0
    %122 = vmatprep.subr.mxu0 0.0
    %123 = vmatpush2.msra.mxu0 0.0
    %124 = vmatprep.subr.mxu0 0.0
    %125 = vmatpush2.msra.mxu0 0.0
    %126 = vmatprep.subr.mxu0 0.0
    %127 = vmatpush2.msra.mxu0 0.0
    %128 = vmatprep.subr.mxu0 0.0
    %129 = vmatpush2.msra.mxu0 0.0
    %130 = vmatprep.subr.mxu0 0.0
    %131 = vmatpush2.msra.mxu0 0.0
    %132 = vmatprep.subr.mxu0 0.0
    %133 = vmatpush2.msra.mxu0 0.0
    %134 = vmatprep.subr.mxu0 0.0
    %135 = vmatpush2.msra.mxu0 0.0
    %136 = vmatprep.subr.mxu0 0.0
    %137 = vmatpush2.msra.mxu0 0.0
    %138 = vmatprep.subr.mxu0 0.0
    %139 = vmatpush2.msra.mxu0 0.0
    %140 = vmatprep.subr.mxu0 0.0
    %141 = vmatpush2.msra.mxu0 0.0
    %142 = vmatprep.subr.mxu0 0.0
    %143 = vmatpush2.msra.mxu0 0.0
    %144 = vmatprep.subr.mxu0 0.0
    %145 = vmatpush2.msra.mxu0 0.0
    %146 = vmatprep.subr.mxu0 0.0
    %147 = vmatpush2.msra.mxu0 0.0
    %148 = vmatprep.subr.mxu0 0.0
    %149 = vmatpush2.msra.mxu0 0.0
    %150 = vmatprep.mubr.f32.mxu0 0.0
    %151 = vmatmul.mubr.f32.gmra.mxu0 %v77
    %v152 = vpop.f32.mrf.mxu0
    %v153 = vadd.f32 0.0, %v152
    %v154 = vpop.f32.mrf.mxu0
    %155 = vmatprep.mubr.f32.mxu0 0.0
    %156 = vmatmul.mubr.f32.gmra.mxu0 %v80
    %v157 = vpop.f32.mrf.mxu0
    %v158 = vadd.f32 0.0, %v157
    %v159 = vpop.f32.mrf.mxu0
    %160 = vdwg.mxu0
    %v161 = vld [vmem:[#allocation2] sm:$0xff]
    %v162 = vld [vmem:[#allocation2 + $0x8] sm:$0xff]
    %v163 = vld [vmem:[#allocation2 + $0x10] sm:$0xff]
    %v164 = vld [vmem:[#allocation2 + $0x18] sm:$0xff]
    %v165 = vld [vmem:[#allocation2 + $0x20] sm:$0xff]
    %v166 = vld [vmem:[#allocation2 + $0x28] sm:$0xff]
    %v167 = vld [vmem:[#allocation4] sm:$0xff]
    %v168 = vld [vmem:[#allocation4 + $0x8] sm:$0xff]
    %v169 = vld [vmem:[#allocation4 + $0x10] sm:$0xff]
    %v170 = vld [vmem:[#allocation4 + $0x18] sm:$0xff]
    %v171 = vld [vmem:[#allocation4 + $0x20] sm:$0xff]
    %v172 = vld [vmem:[#allocation4 + $0x28] sm:$0xff]
    %v173 = vld [vmem:[%s4] sm:$0x1]
    %v174 = vlaneseq
    %v175 = vshrl.u32 %v174, 7
    %v176 = vsub.s32 0, %v175
    %v177 = vrot.slane %v173, %v176
    %v178 = vld [vmem:[%s4 + $0x1] sm:$0x1]
    %v179 = vlaneseq
    %v180 = vshrl.u32 %v179, 7
    %v181 = vsub.s32 0, %v180
    %v182 = vrot.slane %v178, %v181
    %vm183 = vcmask 1041408
    %v184 = vsel %vm183, %v177, %v182
    %vm185 = vcmask 130048
    %v186 = vsel %vm185, %v153, 0.0
    %v187 = vsel %vm185, %v158, 0.0
    %vm188 = vcmask 392192
    %v190 = vsel %vm188, %v186, 0
    %192 = vmatprep.subr.mxu0 0.0
    %193 = vmatpush1.msra.mxu0 0.0
    %194 = vmatprep.subr.mxu0 0.0
    %195 = vmatpush1.msra.mxu0 0.0
    %196 = vmatprep.subr.mxu0 0.0
    %197 = vmatpush1.msra.mxu0 0.0
    %198 = vmatprep.subr.mxu0 0.0
    %199 = vmatpush1.msra.mxu0 0.0
    %200 = vmatprep.subr.mxu0 0.0
    %201 = vmatpush1.msra.mxu0 0.0
    %202 = vmatprep.subr.mxu0 0.0
    %203 = vmatpush1.msra.mxu0 0.0
    %204 = vmatprep.subr.mxu0 0.0
    %205 = vmatpush1.msra.mxu0 0.0
    %206 = vmatprep.subr.mxu0 0.0
    %207 = vmatpush1.msra.mxu0 0.0
    %208 = vmatprep.subr.mxu0 0.0
    %209 = vmatpush1.msra.mxu0 0.0
    %210 = vmatprep.subr.mxu0 0.0
    %211 = vmatpush1.msra.mxu0 0.0
    %212 = vmatprep.subr.mxu0 0.0
    %213 = vmatpush1.msra.mxu0 %v166
    %214 = vmatprep.subr.mxu0 0.0
    %215 = vmatpush1.msra.mxu0 %v165
    %216 = vmatprep.subr.mxu0 0.0
    %217 = vmatpush1.msra.mxu0 %v164
    %218 = vmatprep.subr.mxu0 0.0
    %219 = vmatpush1.msra.mxu0 %v163
    %220 = vmatprep.subr.mxu0 0.0
    %221 = vmatpush1.msra.mxu0 %v162
    %222 = vmatprep.subr.mxu0 0.0
    %223 = vmatpush1.msra.mxu0 %v161
    %224 = vmatprep.subr.mxu0 0.0
    %225 = vmatpush2.msra.mxu0 0.0
    %226 = vmatprep.subr.mxu0 0.0
    %227 = vmatpush2.msra.mxu0 0.0
    %228 = vmatprep.subr.mxu0 0.0
    %229 = vmatpush2.msra.mxu0 0.0
    %230 = vmatprep.subr.mxu0 0.0
    %231 = vmatpush2.msra.mxu0 0.0
    %232 = vmatprep.subr.mxu0 0.0
    %233 = vmatpush2.msra.mxu0 0.0
    %234 = vmatprep.subr.mxu0 0.0
    %235 = vmatpush2.msra.mxu0 0.0
    %236 = vmatprep.subr.mxu0 0.0
    %237 = vmatpush2.msra.mxu0 0.0
    %238 = vmatprep.subr.mxu0 0.0
    %239 = vmatpush2.msra.mxu0 0.0
    %240 = vmatprep.subr.mxu0 0.0
    %241 = vmatpush2.msra.mxu0 0.0
    %242 = vmatprep.subr.mxu0 0.0
    %243 = vmatpush2.msra.mxu0 0.0
    %244 = vmatprep.subr.mxu0 0.0
    %245 = vmatpush2.msra.mxu0 0.0
    %246 = vmatprep.subr.mxu0 0.0
    %247 = vmatpush2.msra.mxu0 0.0
    %248 = vmatprep.subr.mxu0 0.0
    %249 = vmatpush2.msra.mxu0 0.0
    %250 = vmatprep.subr.mxu0 0.0
    %251 = vmatpush2.msra.mxu0 0.0
    %252 = vmatprep.subr.mxu0 0.0
    %253 = vmatpush2.msra.mxu0 0.0
    %254 = vmatprep.subr.mxu0 0.0
    %255 = vmatpush2.msra.mxu0 0.0
    %256 = vmatprep.mubr.f32.mxu0 0.0
    %257 = vmatmul.mubr.f32.gmra.mxu0 %v190
    %v258 = vpop.f32.mrf.mxu0
    %v259 = vadd.f32 0.0, %v258
    %v260 = vpop.f32.mrf.mxu0
    %261 = vdwg.mxu0
    %v263 = vrot.slane %v187, 6
    %v264 = vsel %vm188, %v263, 0
    %266 = vmatprep.subr.mxu0 0.0
    %267 = vmatpush1.msra.mxu0 0.0
    %268 = vmatprep.subr.mxu0 0.0
    %269 = vmatpush1.msra.mxu0 0.0
    %270 = vmatprep.subr.mxu0 0.0
    %271 = vmatpush1.msra.mxu0 0.0
    %272 = vmatprep.subr.mxu0 0.0
    %273 = vmatpush1.msra.mxu0 0.0
    %274 = vmatprep.subr.mxu0 0.0
    %275 = vmatpush1.msra.mxu0 0.0
    %276 = vmatprep.subr.mxu0 0.0
    %277 = vmatpush1.msra.mxu0 0.0
    %278 = vmatprep.subr.mxu0 0.0
    %279 = vmatpush1.msra.mxu0 0.0
    %280 = vmatprep.subr.mxu0 0.0
    %281 = vmatpush1.msra.mxu0 0.0
    %282 = vmatprep.subr.mxu0 0.0
    %283 = vmatpush1.msra.mxu0 0.0
    %284 = vmatprep.subr.mxu0 0.0
    %285 = vmatpush1.msra.mxu0 0.0
    %286 = vmatprep.subr.mxu0 0.0
    %287 = vmatpush1.msra.mxu0 %v172
    %288 = vmatprep.subr.mxu0 0.0
    %289 = vmatpush1.msra.mxu0 %v171
    %290 = vmatprep.subr.mxu0 0.0
    %291 = vmatpush1.msra.mxu0 %v170
    %292 = vmatprep.subr.mxu0 0.0
    %293 = vmatpush1.msra.mxu0 %v169
    %294 = vmatprep.subr.mxu0 0.0
    %295 = vmatpush1.msra.mxu0 %v168
    %296 = vmatprep.subr.mxu0 0.0
    %297 = vmatpush1.msra.mxu0 %v167
    %298 = vmatprep.subr.mxu0 0.0
    %299 = vmatpush2.msra.mxu0 0.0
    %300 = vmatprep.subr.mxu0 0.0
    %301 = vmatpush2.msra.mxu0 0.0
    %302 = vmatprep.subr.mxu0 0.0
    %303 = vmatpush2.msra.mxu0 0.0
    %304 = vmatprep.subr.mxu0 0.0
    %305 = vmatpush2.msra.mxu0 0.0
    %306 = vmatprep.subr.mxu0 0.0
    %307 = vmatpush2.msra.mxu0 0.0
    %308 = vmatprep.subr.mxu0 0.0
    %309 = vmatpush2.msra.mxu0 0.0
    %310 = vmatprep.subr.mxu0 0.0
    %311 = vmatpush2.msra.mxu0 0.0
    %312 = vmatprep.subr.mxu0 0.0
    %313 = vmatpush2.msra.mxu0 0.0
    %314 = vmatprep.subr.mxu0 0.0
    %315 = vmatpush2.msra.mxu0 0.0
    %316 = vmatprep.subr.mxu0 0.0
    %317 = vmatpush2.msra.mxu0 0.0
    %318 = vmatprep.subr.mxu0 0.0
    %319 = vmatpush2.msra.mxu0 0.0
    %320 = vmatprep.subr.mxu0 0.0
    %321 = vmatpush2.msra.mxu0 0.0
    %322 = vmatprep.subr.mxu0 0.0
    %323 = vmatpush2.msra.mxu0 0.0
    %324 = vmatprep.subr.mxu0 0.0
    %325 = vmatpush2.msra.mxu0 0.0
    %326 = vmatprep.subr.mxu0 0.0
    %327 = vmatpush2.msra.mxu0 0.0
    %328 = vmatprep.subr.mxu0 0.0
    %329 = vmatpush2.msra.mxu0 0.0
    %330 = vmatprep.mubr.f32.mxu0 0.0
    %331 = vmatmul.mubr.f32.gmra.mxu0 %v264
    %v332 = vpop.f32.mrf.mxu0
    %v333 = vadd.f32 0.0, %v332
    %v334 = vpop.f32.mrf.mxu0
    %335 = vdwg.mxu0
    %v337 = vrot.slane %v333, 6
    %v339 = vsel %vm183, %v259, %v337
    %v340 = vadd.f32 %v339, %v184
    %v341 = vxor.u32 %v340, 2147483648
    %v342 = vmul.f32 %v341, 1.442695
    %v343 = vpow.pop %v342
    %v344 = vadd.f32 %v343, 1.0
    %v345 = vrcp.pop %v344
    %v346 = vmul.f32 1.0, %v345
    %v347 = vtanh.pop %v340
    %v348 = vmul.f32 %v346, 0.0
    %350 = vrot.lane.b32.xlu0 %v347, 32
    %v351 = vpop.permute.xlu0 %350
    %v353 = vmul.f32 %v346, %v351
    %355 = vrot.lane.b32.xlu0 %v353, 32
    %v356 = vpop.permute.xlu0 %355
    %v358 = vadd.f32 %v348, %v356
    %v359 = vtanh.pop %v358
    %361 = vrot.lane.b32.xlu0 %v359, 32
    %v362 = vpop.permute.xlu0 %361
    %v364 = vmul.f32 %v346, %v362
    %v366 = vrot.slane %v364, 6
    %367 = vrot.lane.b32.xlu0 %v366, 80
    %v368 = vpop.permute.xlu0 %367
    %v370 = vsel %vm185, %v153, %v368
    %v371 = vsel %vm185, %v158, %v368
    %v373 = vrot.slane %v370, 2
    %v374 = vsel %vm188, %v373, 0
    %376 = vmatprep.subr.mxu0 0.0
    %377 = vmatpush1.msra.mxu0 0.0
    %378 = vmatprep.subr.mxu0 0.0
    %379 = vmatpush1.msra.mxu0 0.0
    %380 = vmatprep.subr.mxu0 0.0
    %381 = vmatpush1.msra.mxu0 0.0
    %382 = vmatprep.subr.mxu0 0.0
    %383 = vmatpush1.msra.mxu0 0.0
    %384 = vmatprep.subr.mxu0 0.0
    %385 = vmatpush1.msra.mxu0 0.0
    %386 = vmatprep.subr.mxu0 0.0
    %387 = vmatpush1.msra.mxu0 0.0
    %388 = vmatprep.subr.mxu0 0.0
    %389 = vmatpush1.msra.mxu0 0.0
    %390 = vmatprep.subr.mxu0 0.0
    %391 = vmatpush1.msra.mxu0 0.0
    %392 = vmatprep.subr.mxu0 0.0
    %393 = vmatpush1.msra.mxu0 0.0
    %394 = vmatprep.subr.mxu0 0.0
    %395 = vmatpush1.msra.mxu0 0.0
    %396 = vmatprep.subr.mxu0 0.0
    %397 = vmatpush1.msra.mxu0 %v166
    %398 = vmatprep.subr.mxu0 0.0
    %399 = vmatpush1.msra.mxu0 %v165
    %400 = vmatprep.subr.mxu0 0.0
    %401 = vmatpush1.msra.mxu0 %v164
    %402 = vmatprep.subr.mxu0 0.0
    %403 = vmatpush1.msra.mxu0 %v163
    %404 = vmatprep.subr.mxu0 0.0
    %405 = vmatpush1.msra.mxu0 %v162
    %406 = vmatprep.subr.mxu0 0.0
    %407 = vmatpush1.msra.mxu0 %v161
    %408 = vmatprep.subr.mxu0 0.0
    %409 = vmatpush2.msra.mxu0 0.0
    %410 = vmatprep.subr.mxu0 0.0
    %411 = vmatpush2.msra.mxu0 0.0
    %412 = vmatprep.subr.mxu0 0.0
    %413 = vmatpush2.msra.mxu0 0.0
    %414 = vmatprep.subr.mxu0 0.0
    %415 = vmatpush2.msra.mxu0 0.0
    %416 = vmatprep.subr.mxu0 0.0
    %417 = vmatpush2.msra.mxu0 0.0
    %418 = vmatprep.subr.mxu0 0.0
    %419 = vmatpush2.msra.mxu0 0.0
    %420 = vmatprep.subr.mxu0 0.0
    %421 = vmatpush2.msra.mxu0 0.0
    %422 = vmatprep.subr.mxu0 0.0
    %423 = vmatpush2.msra.mxu0 0.0
    %424 = vmatprep.subr.mxu0 0.0
    %425 = vmatpush2.msra.mxu0 0.0
    %426 = vmatprep.subr.mxu0 0.0
    %427 = vmatpush2.msra.mxu0 0.0
    %428 = vmatprep.subr.mxu0 0.0
    %429 = vmatpush2.msra.mxu0 0.0
    %430 = vmatprep.subr.mxu0 0.0
    %431 = vmatpush2.msra.mxu0 0.0
    %432 = vmatprep.subr.mxu0 0.0
    %433 = vmatpush2.msra.mxu0 0.0
    %434 = vmatprep.subr.mxu0 0.0
    %435 = vmatpush2.msra.mxu0 0.0
    %436 = vmatprep.subr.mxu0 0.0
    %437 = vmatpush2.msra.mxu0 0.0
    %438 = vmatprep.subr.mxu0 0.0
    %439 = vmatpush2.msra.mxu0 0.0
    %440 = vmatprep.mubr.f32.mxu0 0.0
    %441 = vmatmul.mubr.f32.gmra.mxu0 %v374
    %v442 = vpop.f32.mrf.mxu0
    %v443 = vadd.f32 0.0, %v442
    %v444 = vpop.f32.mrf.mxu0
    %445 = vdwg.mxu0
    %v447 = vrot.slane %v371, 4
    %v448 = vsel %vm188, %v447, 0
    %450 = vmatprep.subr.mxu0 0.0
    %451 = vmatpush1.msra.mxu0 0.0
    %452 = vmatprep.subr.mxu0 0.0
    %453 = vmatpush1.msra.mxu0 0.0
    %454 = vmatprep.subr.mxu0 0.0
    %455 = vmatpush1.msra.mxu0 0.0
    %456 = vmatprep.subr.mxu0 0.0
    %457 = vmatpush1.msra.mxu0 0.0
    %458 = vmatprep.subr.mxu0 0.0
    %459 = vmatpush1.msra.mxu0 0.0
    %460 = vmatprep.subr.mxu0 0.0
    %461 = vmatpush1.msra.mxu0 0.0
    %462 = vmatprep.subr.mxu0 0.0
    %463 = vmatpush1.msra.mxu0 0.0
    %464 = vmatprep.subr.mxu0 0.0
    %465 = vmatpush1.msra.mxu0 0.0
    %466 = vmatprep.subr.mxu0 0.0
    %467 = vmatpush1.msra.mxu0 0.0
    %468 = vmatprep.subr.mxu0 0.0
    %469 = vmatpush1.msra.mxu0 0.0
    %470 = vmatprep.subr.mxu0 0.0
    %471 = vmatpush1.msra.mxu0 %v172
    %472 = vmatprep.subr.mxu0 0.0
    %473 = vmatpush1.msra.mxu0 %v171
    %474 = vmatprep.subr.mxu0 0.0
    %475 = vmatpush1.msra.mxu0 %v170
    %476 = vmatprep.subr.mxu0 0.0
    %477 = vmatpush1.msra.mxu0 %v169
    %478 = vmatprep.subr.mxu0 0.0
    %479 = vmatpush1.msra.mxu0 %v168
    %480 = vmatprep.subr.mxu0 0.0
    %481 = vmatpush1.msra.mxu0 %v167
    %482 = vmatprep.subr.mxu0 0.0
    %483 = vmatpush2.msra.mxu0 0.0
    %484 = vmatprep.subr.mxu0 0.0
    %485 = vmatpush2.msra.mxu0 0.0
    %486 = vmatprep.subr.mxu0 0.0
    %487 = vmatpush2.msra.mxu0 0.0
    %488 = vmatprep.subr.mxu0 0.0
    %489 = vmatpush2.msra.mxu0 0.0
    %490 = vmatprep.subr.mxu0 0.0
    %491 = vmatpush2.msra.mxu0 0.0
    %492 = vmatprep.subr.mxu0 0.0
    %493 = vmatpush2.msra.mxu0 0.0
    %494 = vmatprep.subr.mxu0 0.0
    %495 = vmatpush2.msra.mxu0 0.0
    %496 = vmatprep.subr.mxu0 0.0
    %497 = vmatpush2.msra.mxu0 0.0
    %498 = vmatprep.subr.mxu0 0.0
    %499 = vmatpush2.msra.mxu0 0.0
    %500 = vmatprep.subr.mxu0 0.0
    %501 = vmatpush2.msra.mxu0 0.0
    %502 = vmatprep.subr.mxu0 0.0
    %503 = vmatpush2.msra.mxu0 0.0
    %504 = vmatprep.subr.mxu0 0.0
    %505 = vmatpush2.msra.mxu0 0.0
    %506 = vmatprep.subr.mxu0 0.0
    %507 = vmatpush2.msra.mxu0 0.0
    %508 = vmatprep.subr.mxu0 0.0
    %509 = vmatpush2.msra.mxu0 0.0
    %510 = vmatprep.subr.mxu0 0.0
    %511 = vmatpush2.msra.mxu0 0.0
    %512 = vmatprep.subr.mxu0 0.0
    %513 = vmatpush2.msra.mxu0 0.0
    %514 = vmatprep.mubr.f32.mxu0 0.0
    %515 = vmatmul.mubr.f32.gmra.mxu0 %v448
    %v516 = vpop.f32.mrf.mxu0
    %v517 = vadd.f32 0.0, %v516
    %v518 = vpop.f32.mrf.mxu0
    %519 = vdwg.mxu0
    %v521 = vrot.slane %v517, 6
    %v523 = vsel %vm183, %v443, %v521
    %v524 = vadd.f32 %v523, %v184
    %v525 = vxor.u32 %v524, 2147483648
    %v526 = vmul.f32 %v525, 1.442695
    %v527 = vpow.pop %v526
    %v528 = vadd.f32 %v527, 1.0
    %v529 = vrcp.pop %v528
    %v530 = vmul.f32 1.0, %v529
    %v531 = vtanh.pop %v524
    %v532 = vmul.f32 %v530, %v358
    %534 = vrot.lane.b32.xlu0 %v531, 32
    %v535 = vpop.permute.xlu0 %534
    %v537 = vmul.f32 %v530, %v535
    %539 = vrot.lane.b32.xlu0 %v537, 32
    %v540 = vpop.permute.xlu0 %539
    %v542 = vadd.f32 %v532, %v540
    %v543 = vtanh.pop %v542
    %545 = vrot.lane.b32.xlu0 %v543, 32
    %v546 = vpop.permute.xlu0 %545
    %v548 = vmul.f32 %v530, %v546
    %v550 = vrot.slane %v548, 4
    %551 = vrot.lane.b32.xlu0 %v550, 80
    %v552 = vpop.permute.xlu0 %551
    %v554 = vsel %vm185, %v153, %v552
    %555 = vrot.lane.b32.xlu0 %v548, 80
    %v556 = vpop.permute.xlu0 %555
    %v558 = vsel %vm185, %v158, %v556
    %v560 = vrot.slane %v554, 4
    %v561 = vsel %vm188, %v560, 0
    %563 = vmatprep.subr.mxu0 0.0
    %564 = vmatpush1.msra.mxu0 0.0
    %565 = vmatprep.subr.mxu0 0.0
    %566 = vmatpush1.msra.mxu0 0.0
    %567 = vmatprep.subr.mxu0 0.0
    %568 = vmatpush1.msra.mxu0 0.0
    %569 = vmatprep.subr.mxu0 0.0
    %570 = vmatpush1.msra.mxu0 0.0
    %571 = vmatprep.subr.mxu0 0.0
    %572 = vmatpush1.msra.mxu0 0.0
    %573 = vmatprep.subr.mxu0 0.0
    %574 = vmatpush1.msra.mxu0 0.0
    %575 = vmatprep.subr.mxu0 0.0
    %576 = vmatpush1.msra.mxu0 0.0
    %577 = vmatprep.subr.mxu0 0.0
    %578 = vmatpush1.msra.mxu0 0.0
    %579 = vmatprep.subr.mxu0 0.0
    %580 = vmatpush1.msra.mxu0 0.0
    %581 = vmatprep.subr.mxu0 0.0
    %582 = vmatpush1.msra.mxu0 0.0
    %583 = vmatprep.subr.mxu0 0.0
    %584 = vmatpush1.msra.mxu0 %v166
    %585 = vmatprep.subr.mxu0 0.0
    %586 = vmatpush1.msra.mxu0 %v165
    %587 = vmatprep.subr.mxu0 0.0
    %588 = vmatpush1.msra.mxu0 %v164
    %589 = vmatprep.subr.mxu0 0.0
    %590 = vmatpush1.msra.mxu0 %v163
    %591 = vmatprep.subr.mxu0 0.0
    %592 = vmatpush1.msra.mxu0 %v162
    %593 = vmatprep.subr.mxu0 0.0
    %594 = vmatpush1.msra.mxu0 %v161
    %595 = vmatprep.subr.mxu0 0.0
    %596 = vmatpush2.msra.mxu0 0.0
    %597 = vmatprep.subr.mxu0 0.0
    %598 = vmatpush2.msra.mxu0 0.0
    %599 = vmatprep.subr.mxu0 0.0
    %600 = vmatpush2.msra.mxu0 0.0
    %601 = vmatprep.subr.mxu0 0.0
    %602 = vmatpush2.msra.mxu0 0.0
    %603 = vmatprep.subr.mxu0 0.0
    %604 = vmatpush2.msra.mxu0 0.0
    %605 = vmatprep.subr.mxu0 0.0
    %606 = vmatpush2.msra.mxu0 0.0
    %607 = vmatprep.subr.mxu0 0.0
    %608 = vmatpush2.msra.mxu0 0.0
    %609 = vmatprep.subr.mxu0 0.0
    %610 = vmatpush2.msra.mxu0 0.0
    %611 = vmatprep.subr.mxu0 0.0
    %612 = vmatpush2.msra.mxu0 0.0
    %613 = vmatprep.subr.mxu0 0.0
    %614 = vmatpush2.msra.mxu0 0.0
    %615 = vmatprep.subr.mxu0 0.0
    %616 = vmatpush2.msra.mxu0 0.0
    %617 = vmatprep.subr.mxu0 0.0
    %618 = vmatpush2.msra.mxu0 0.0
    %619 = vmatprep.subr.mxu0 0.0
    %620 = vmatpush2.msra.mxu0 0.0
    %621 = vmatprep.subr.mxu0 0.0
    %622 = vmatpush2.msra.mxu0 0.0
    %623 = vmatprep.subr.mxu0 0.0
    %624 = vmatpush2.msra.mxu0 0.0
    %625 = vmatprep.subr.mxu0 0.0
    %626 = vmatpush2.msra.mxu0 0.0
    %627 = vmatprep.mubr.f32.mxu0 0.0
    %628 = vmatmul.mubr.f32.gmra.mxu0 %v561
    %v629 = vpop.f32.mrf.mxu0
    %v630 = vadd.f32 0.0, %v629
    %v631 = vpop.f32.mrf.mxu0
    %632 = vdwg.mxu0
    %v634 = vrot.slane %v558, 2
    %v635 = vsel %vm188, %v634, 0
    %637 = vmatprep.subr.mxu0 0.0
    %638 = vmatpush1.msra.mxu0 0.0
    %639 = vmatprep.subr.mxu0 0.0
    %640 = vmatpush1.msra.mxu0 0.0
    %641 = vmatprep.subr.mxu0 0.0
    %642 = vmatpush1.msra.mxu0 0.0
    %643 = vmatprep.subr.mxu0 0.0
    %644 = vmatpush1.msra.mxu0 0.0
    %645 = vmatprep.subr.mxu0 0.0
    %646 = vmatpush1.msra.mxu0 0.0
    %647 = vmatprep.subr.mxu0 0.0
    %648 = vmatpush1.msra.mxu0 0.0
    %649 = vmatprep.subr.mxu0 0.0
    %650 = vmatpush1.msra.mxu0 0.0
    %651 = vmatprep.subr.mxu0 0.0
    %652 = vmatpush1.msra.mxu0 0.0
    %653 = vmatprep.subr.mxu0 0.0
    %654 = vmatpush1.msra.mxu0 0.0
    %655 = vmatprep.subr.mxu0 0.0
    %656 = vmatpush1.msra.mxu0 0.0
    %657 = vmatprep.subr.mxu0 0.0
    %658 = vmatpush1.msra.mxu0 %v172
    %659 = vmatprep.subr.mxu0 0.0
    %660 = vmatpush1.msra.mxu0 %v171
    %661 = vmatprep.subr.mxu0 0.0
    %662 = vmatpush1.msra.mxu0 %v170
    %663 = vmatprep.subr.mxu0 0.0
    %664 = vmatpush1.msra.mxu0 %v169
    %665 = vmatprep.subr.mxu0 0.0
    %666 = vmatpush1.msra.mxu0 %v168
    %667 = vmatprep.subr.mxu0 0.0
    %668 = vmatpush1.msra.mxu0 %v167
    %669 = vmatprep.subr.mxu0 0.0
    %670 = vmatpush2.msra.mxu0 0.0
    %671 = vmatprep.subr.mxu0 0.0
    %672 = vmatpush2.msra.mxu0 0.0
    %673 = vmatprep.subr.mxu0 0.0
    %674 = vmatpush2.msra.mxu0 0.0
    %675 = vmatprep.subr.mxu0 0.0
    %676 = vmatpush2.msra.mxu0 0.0
    %677 = vmatprep.subr.mxu0 0.0
    %678 = vmatpush2.msra.mxu0 0.0
    %679 = vmatprep.subr.mxu0 0.0
    %680 = vmatpush2.msra.mxu0 0.0
    %681 = vmatprep.subr.mxu0 0.0
    %682 = vmatpush2.msra.mxu0 0.0
    %683 = vmatprep.subr.mxu0 0.0
    %684 = vmatpush2.msra.mxu0 0.0
    %685 = vmatprep.subr.mxu0 0.0
    %686 = vmatpush2.msra.mxu0 0.0
    %687 = vmatprep.subr.mxu0 0.0
    %688 = vmatpush2.msra.mxu0 0.0
    %689 = vmatprep.subr.mxu0 0.0
    %690 = vmatpush2.msra.mxu0 0.0
    %691 = vmatprep.subr.mxu0 0.0
    %692 = vmatpush2.msra.mxu0 0.0
    %693 = vmatprep.subr.mxu0 0.0
    %694 = vmatpush2.msra.mxu0 0.0
    %695 = vmatprep.subr.mxu0 0.0
    %696 = vmatpush2.msra.mxu0 0.0
    %697 = vmatprep.subr.mxu0 0.0
    %698 = vmatpush2.msra.mxu0 0.0
    %699 = vmatprep.subr.mxu0 0.0
    %700 = vmatpush2.msra.mxu0 0.0
    %701 = vmatprep.mubr.f32.mxu0 0.0
    %702 = vmatmul.mubr.f32.gmra.mxu0 %v635
    %v703 = vpop.f32.mrf.mxu0
    %v704 = vadd.f32 0.0, %v703
    %v705 = vpop.f32.mrf.mxu0
    %706 = vdwg.mxu0
    %v708 = vrot.slane %v704, 6
    %v710 = vsel %vm183, %v630, %v708
    %v711 = vadd.f32 %v710, %v184
    %v712 = vxor.u32 %v711, 2147483648
    %v713 = vmul.f32 %v712, 1.442695
    %v714 = vpow.pop %v713
    %v715 = vadd.f32 %v714, 1.0
    %v716 = vrcp.pop %v715
    %v717 = vmul.f32 1.0, %v716
    %v718 = vtanh.pop %v711
    %v719 = vmul.f32 %v717, %v542
    %721 = vrot.lane.b32.xlu0 %v718, 32
    %v722 = vpop.permute.xlu0 %721
    %v724 = vmul.f32 %v717, %v722
    %726 = vrot.lane.b32.xlu0 %v724, 32
    %v727 = vpop.permute.xlu0 %726
    %v729 = vadd.f32 %v719, %v727
    %v730 = vtanh.pop %v729
    %732 = vrot.lane.b32.xlu0 %v730, 32
    %v733 = vpop.permute.xlu0 %732
    %v735 = vmul.f32 %v717, %v733
    %v737 = vrot.slane %v735, 2
    %738 = vrot.lane.b32.xlu0 %v737, 80
    %v739 = vpop.permute.xlu0 %738
    %v741 = vsel %vm185, %v153, %v739
    %v742 = vsel %vm185, %v158, %v739
    %v744 = vrot.slane %v741, 6
    %v745 = vsel %vm188, %v744, 0
    %747 = vmatprep.subr.mxu0 0.0
    %748 = vmatpush1.msra.mxu0 0.0
    %749 = vmatprep.subr.mxu0 0.0
    %750 = vmatpush1.msra.mxu0 0.0
    %751 = vmatprep.subr.mxu0 0.0
    %752 = vmatpush1.msra.mxu0 0.0
    %753 = vmatprep.subr.mxu0 0.0
    %754 = vmatpush1.msra.mxu0 0.0
    %755 = vmatprep.subr.mxu0 0.0
    %756 = vmatpush1.msra.mxu0 0.0
    %757 = vmatprep.subr.mxu0 0.0
    %758 = vmatpush1.msra.mxu0 0.0
    %759 = vmatprep.subr.mxu0 0.0
    %760 = vmatpush1.msra.mxu0 0.0
    %761 = vmatprep.subr.mxu0 0.0
    %762 = vmatpush1.msra.mxu0 0.0
    %763 = vmatprep.subr.mxu0 0.0
    %764 = vmatpush1.msra.mxu0 0.0
    %765 = vmatprep.subr.mxu0 0.0
    %766 = vmatpush1.msra.mxu0 0.0
    %767 = vmatprep.subr.mxu0 0.0
    %768 = vmatpush1.msra.mxu0 %v166
    %769 = vmatprep.subr.mxu0 0.0
    %770 = vmatpush1.msra.mxu0 %v165
    %771 = vmatprep.subr.mxu0 0.0
    %772 = vmatpush1.msra.mxu0 %v164
    %773 = vmatprep.subr.mxu0 0.0
    %774 = vmatpush1.msra.mxu0 %v163
    %775 = vmatprep.subr.mxu0 0.0
    %776 = vmatpush1.msra.mxu0 %v162
    %777 = vmatprep.subr.mxu0 0.0
    %778 = vmatpush1.msra.mxu0 %v161
    %779 = vmatprep.subr.mxu0 0.0
    %780 = vmatpush2.msra.mxu0 0.0
    %781 = vmatprep.subr.mxu0 0.0
    %782 = vmatpush2.msra.mxu0 0.0
    %783 = vmatprep.subr.mxu0 0.0
    %784 = vmatpush2.msra.mxu0 0.0
    %785 = vmatprep.subr.mxu0 0.0
    %786 = vmatpush2.msra.mxu0 0.0
    %787 = vmatprep.subr.mxu0 0.0
    %788 = vmatpush2.msra.mxu0 0.0
    %789 = vmatprep.subr.mxu0 0.0
    %790 = vmatpush2.msra.mxu0 0.0
    %791 = vmatprep.subr.mxu0 0.0
    %792 = vmatpush2.msra.mxu0 0.0
    %793 = vmatprep.subr.mxu0 0.0
    %794 = vmatpush2.msra.mxu0 0.0
    %795 = vmatprep.subr.mxu0 0.0
    %796 = vmatpush2.msra.mxu0 0.0
    %797 = vmatprep.subr.mxu0 0.0
    %798 = vmatpush2.msra.mxu0 0.0
    %799 = vmatprep.subr.mxu0 0.0
    %800 = vmatpush2.msra.mxu0 0.0
    %801 = vmatprep.subr.mxu0 0.0
    %802 = vmatpush2.msra.mxu0 0.0
    %803 = vmatprep.subr.mxu0 0.0
    %804 = vmatpush2.msra.mxu0 0.0
    %805 = vmatprep.subr.mxu0 0.0
    %806 = vmatpush2.msra.mxu0 0.0
    %807 = vmatprep.subr.mxu0 0.0
    %808 = vmatpush2.msra.mxu0 0.0
    %809 = vmatprep.subr.mxu0 0.0
    %810 = vmatpush2.msra.mxu0 0.0
    %811 = vmatprep.mubr.f32.mxu0 0.0
    %812 = vmatmul.mubr.f32.gmra.mxu0 %v745
    %v813 = vpop.f32.mrf.mxu0
    %v814 = vadd.f32 0.0, %v813
    %v815 = vpop.f32.mrf.mxu0
    %816 = vdwg.mxu0
    %v818 = vsel %vm188, %v742, 0
    %820 = vmatprep.subr.mxu0 0.0
    %821 = vmatpush1.msra.mxu0 0.0
    %822 = vmatprep.subr.mxu0 0.0
    %823 = vmatpush1.msra.mxu0 0.0
    %824 = vmatprep.subr.mxu0 0.0
    %825 = vmatpush1.msra.mxu0 0.0
    %826 = vmatprep.subr.mxu0 0.0
    %827 = vmatpush1.msra.mxu0 0.0
    %828 = vmatprep.subr.mxu0 0.0
    %829 = vmatpush1.msra.mxu0 0.0
    %830 = vmatprep.subr.mxu0 0.0
    %831 = vmatpush1.msra.mxu0 0.0
    %832 = vmatprep.subr.mxu0 0.0
    %833 = vmatpush1.msra.mxu0 0.0
    %834 = vmatprep.subr.mxu0 0.0
    %835 = vmatpush1.msra.mxu0 0.0
    %836 = vmatprep.subr.mxu0 0.0
    %837 = vmatpush1.msra.mxu0 0.0
    %838 = vmatprep.subr.mxu0 0.0
    %839 = vmatpush1.msra.mxu0 0.0
    %840 = vmatprep.subr.mxu0 0.0
    %841 = vmatpush1.msra.mxu0 %v172
    %842 = vmatprep.subr.mxu0 0.0
    %843 = vmatpush1.msra.mxu0 %v171
    %844 = vmatprep.subr.mxu0 0.0
    %845 = vmatpush1.msra.mxu0 %v170
    %846 = vmatprep.subr.mxu0 0.0
    %847 = vmatpush1.msra.mxu0 %v169
    %848 = vmatprep.subr.mxu0 0.0
    %849 = vmatpush1.msra.mxu0 %v168
    %850 = vmatprep.subr.mxu0 0.0
    %851 = vmatpush1.msra.mxu0 %v167
    %852 = vmatprep.subr.mxu0 0.0
    %853 = vmatpush2.msra.mxu0 0.0
    %854 = vmatprep.subr.mxu0 0.0
    %855 = vmatpush2.msra.mxu0 0.0
    %856 = vmatprep.subr.mxu0 0.0
    %857 = vmatpush2.msra.mxu0 0.0
    %858 = vmatprep.subr.mxu0 0.0
    %859 = vmatpush2.msra.mxu0 0.0
    %860 = vmatprep.subr.mxu0 0.0
    %861 = vmatpush2.msra.mxu0 0.0
    %862 = vmatprep.subr.mxu0 0.0
    %863 = vmatpush2.msra.mxu0 0.0
    %864 = vmatprep.subr.mxu0 0.0
    %865 = vmatpush2.msra.mxu0 0.0
    %866 = vmatprep.subr.mxu0 0.0
    %867 = vmatpush2.msra.mxu0 0.0
    %868 = vmatprep.subr.mxu0 0.0
    %869 = vmatpush2.msra.mxu0 0.0
    %870 = vmatprep.subr.mxu0 0.0
    %871 = vmatpush2.msra.mxu0 0.0
    %872 = vmatprep.subr.mxu0 0.0
    %873 = vmatpush2.msra.mxu0 0.0
    %874 = vmatprep.subr.mxu0 0.0
    %875 = vmatpush2.msra.mxu0 0.0
    %876 = vmatprep.subr.mxu0 0.0
    %877 = vmatpush2.msra.mxu0 0.0
    %878 = vmatprep.subr.mxu0 0.0
    %879 = vmatpush2.msra.mxu0 0.0
    %880 = vmatprep.subr.mxu0 0.0
    %881 = vmatpush2.msra.mxu0 0.0
    %882 = vmatprep.subr.mxu0 0.0
    %883 = vmatpush2.msra.mxu0 0.0
    %884 = vmatprep.mubr.f32.mxu0 0.0
    %885 = vmatmul.mubr.f32.gmra.mxu0 %v818
    %v886 = vpop.f32.mrf.mxu0
    %v887 = vadd.f32 0.0, %v886
    %v888 = vpop.f32.mrf.mxu0
    %889 = vdwg.mxu0
    %v891 = vrot.slane %v887, 6
    %v893 = vsel %vm183, %v814, %v891
    %v894 = vadd.f32 %v893, %v184
    %v895 = vxor.u32 %v894, 2147483648
    %v896 = vmul.f32 %v895, 1.442695
    %v897 = vpow.pop %v896
    %v898 = vadd.f32 %v897, 1.0
    %v899 = vrcp.pop %v898
    %v900 = vmul.f32 1.0, %v899
    %v901 = vtanh.pop %v894
    %v902 = vmul.f32 %v900, %v729
    %904 = vrot.lane.b32.xlu0 %v901, 32
    %v905 = vpop.permute.xlu0 %904
    %v907 = vmul.f32 %v900, %v905
    %909 = vrot.lane.b32.xlu0 %v907, 32
    %v910 = vpop.permute.xlu0 %909
    %v912 = vadd.f32 %v902, %v910
    %v913 = vtanh.pop %v912
    %915 = vrot.lane.b32.xlu0 %v913, 32
    %v916 = vpop.permute.xlu0 %915
    %v918 = vmul.f32 %v900, %v916
    %920 = vrot.lane.b32.xlu0 %v918, 80
    %v921 = vpop.permute.xlu0 %920
    %v923 = vsel %vm185, %v158, %v921
    %v924 = vrot.slane %v918, 4
    %925 = vrot.lane.b32.xlu0 %v924, 80
    %v926 = vpop.permute.xlu0 %925
    %v928 = vsel %vm185, %v153, %v926
    %v930 = vsel %vm188, %v923, 0
    %932 = vmatprep.subr.mxu0 0.0
    %933 = vmatpush1.msra.mxu0 0.0
    %934 = vmatprep.subr.mxu0 0.0
    %935 = vmatpush1.msra.mxu0 0.0
    %936 = vmatprep.subr.mxu0 0.0
    %937 = vmatpush1.msra.mxu0 0.0
    %938 = vmatprep.subr.mxu0 0.0
    %939 = vmatpush1.msra.mxu0 0.0
    %940 = vmatprep.subr.mxu0 0.0
    %941 = vmatpush1.msra.mxu0 0.0
    %942 = vmatprep.subr.mxu0 0.0
    %943 = vmatpush1.msra.mxu0 0.0
    %944 = vmatprep.subr.mxu0 0.0
    %945 = vmatpush1.msra.mxu0 0.0
    %946 = vmatprep.subr.mxu0 0.0
    %947 = vmatpush1.msra.mxu0 0.0
    %948 = vmatprep.subr.mxu0 0.0
    %949 = vmatpush1.msra.mxu0 0.0
    %950 = vmatprep.subr.mxu0 0.0
    %951 = vmatpush1.msra.mxu0 0.0
    %952 = vmatprep.subr.mxu0 0.0
    %953 = vmatpush1.msra.mxu0 %v166
    %954 = vmatprep.subr.mxu0 0.0
    %955 = vmatpush1.msra.mxu0 %v165
    %956 = vmatprep.subr.mxu0 0.0
    %957 = vmatpush1.msra.mxu0 %v164
    %958 = vmatprep.subr.mxu0 0.0
    %959 = vmatpush1.msra.mxu0 %v163
    %960 = vmatprep.subr.mxu0 0.0
    %961 = vmatpush1.msra.mxu0 %v162
    %962 = vmatprep.subr.mxu0 0.0
    %963 = vmatpush1.msra.mxu0 %v161
    %964 = vmatprep.subr.mxu0 0.0
    %965 = vmatpush2.msra.mxu0 0.0
    %966 = vmatprep.subr.mxu0 0.0
    %967 = vmatpush2.msra.mxu0 0.0
    %968 = vmatprep.subr.mxu0 0.0
    %969 = vmatpush2.msra.mxu0 0.0
    %970 = vmatprep.subr.mxu0 0.0
    %971 = vmatpush2.msra.mxu0 0.0
    %972 = vmatprep.subr.mxu0 0.0
    %973 = vmatpush2.msra.mxu0 0.0
    %974 = vmatprep.subr.mxu0 0.0
    %975 = vmatpush2.msra.mxu0 0.0
    %976 = vmatprep.subr.mxu0 0.0
    %977 = vmatpush2.msra.mxu0 0.0
    %978 = vmatprep.subr.mxu0 0.0
    %979 = vmatpush2.msra.mxu0 0.0
    %980 = vmatprep.subr.mxu0 0.0
    %981 = vmatpush2.msra.mxu0 0.0
    %982 = vmatprep.subr.mxu0 0.0
    %983 = vmatpush2.msra.mxu0 0.0
    %984 = vmatprep.subr.mxu0 0.0
    %985 = vmatpush2.msra.mxu0 0.0
    %986 = vmatprep.subr.mxu0 0.0
    %987 = vmatpush2.msra.mxu0 0.0
    %988 = vmatprep.subr.mxu0 0.0
    %989 = vmatpush2.msra.mxu0 0.0
    %990 = vmatprep.subr.mxu0 0.0
    %991 = vmatpush2.msra.mxu0 0.0
    %992 = vmatprep.subr.mxu0 0.0
    %993 = vmatpush2.msra.mxu0 0.0
    %994 = vmatprep.subr.mxu0 0.0
    %995 = vmatpush2.msra.mxu0 0.0
    %996 = vmatprep.mubr.f32.mxu0 0.0
    %997 = vmatmul.mubr.f32.gmra.mxu0 %v930
    %v998 = vpop.f32.mrf.mxu0
    %v999 = vadd.f32 0.0, %v998
    %v1000 = vpop.f32.mrf.mxu0
    %1001 = vdwg.mxu0
    %v1003 = vrot.slane %v928, 6
    %v1004 = vsel %vm188, %v1003, 0
    %1006 = vmatprep.subr.mxu0 0.0
    %1007 = vmatpush1.msra.mxu0 0.0
    %1008 = vmatprep.subr.mxu0 0.0
    %1009 = vmatpush1.msra.mxu0 0.0
    %1010 = vmatprep.subr.mxu0 0.0
    %1011 = vmatpush1.msra.mxu0 0.0
    %1012 = vmatprep.subr.mxu0 0.0
    %1013 = vmatpush1.msra.mxu0 0.0
    %1014 = vmatprep.subr.mxu0 0.0
    %1015 = vmatpush1.msra.mxu0 0.0
    %1016 = vmatprep.subr.mxu0 0.0
    %1017 = vmatpush1.msra.mxu0 0.0
    %1018 = vmatprep.subr.mxu0 0.0
    %1019 = vmatpush1.msra.mxu0 0.0
    %1020 = vmatprep.subr.mxu0 0.0
    %1021 = vmatpush1.msra.mxu0 0.0
    %1022 = vmatprep.subr.mxu0 0.0
    %1023 = vmatpush1.msra.mxu0 0.0
    %1024 = vmatprep.subr.mxu0 0.0
    %1025 = vmatpush1.msra.mxu0 0.0
    %1026 = vmatprep.subr.mxu0 0.0
    %1027 = vmatpush1.msra.mxu0 %v172
    %1028 = vmatprep.subr.mxu0 0.0
    %1029 = vmatpush1.msra.mxu0 %v171
    %1030 = vmatprep.subr.mxu0 0.0
    %1031 = vmatpush1.msra.mxu0 %v170
    %1032 = vmatprep.subr.mxu0 0.0
    %1033 = vmatpush1.msra.mxu0 %v169
    %1034 = vmatprep.subr.mxu0 0.0
    %1035 = vmatpush1.msra.mxu0 %v168
    %1036 = vmatprep.subr.mxu0 0.0
    %1037 = vmatpush1.msra.mxu0 %v167
    %1038 = vmatprep.subr.mxu0 0.0
    %1039 = vmatpush2.msra.mxu0 0.0
    %1040 = vmatprep.subr.mxu0 0.0
    %1041 = vmatpush2.msra.mxu0 0.0
    %1042 = vmatprep.subr.mxu0 0.0
    %1043 = vmatpush2.msra.mxu0 0.0
    %1044 = vmatprep.subr.mxu0 0.0
    %1045 = vmatpush2.msra.mxu0 0.0
    %1046 = vmatprep.subr.mxu0 0.0
    %1047 = vmatpush2.msra.mxu0 0.0
    %1048 = vmatprep.subr.mxu0 0.0
    %1049 = vmatpush2.msra.mxu0 0.0
    %1050 = vmatprep.subr.mxu0 0.0
    %1051 = vmatpush2.msra.mxu0 0.0
    %1052 = vmatprep.subr.mxu0 0.0
    %1053 = vmatpush2.msra.mxu0 0.0
    %1054 = vmatprep.subr.mxu0 0.0
    %1055 = vmatpush2.msra.mxu0 0.0
    %1056 = vmatprep.subr.mxu0 0.0
    %1057 = vmatpush2.msra.mxu0 0.0
    %1058 = vmatprep.subr.mxu0 0.0
    %1059 = vmatpush2.msra.mxu0 0.0
    %1060 = vmatprep.subr.mxu0 0.0
    %1061 = vmatpush2.msra.mxu0 0.0
    %1062 = vmatprep.subr.mxu0 0.0
    %1063 = vmatpush2.msra.mxu0 0.0
    %1064 = vmatprep.subr.mxu0 0.0
    %1065 = vmatpush2.msra.mxu0 0.0
    %1066 = vmatprep.subr.mxu0 0.0
    %1067 = vmatpush2.msra.mxu0 0.0
    %1068 = vmatprep.subr.mxu0 0.0
    %1069 = vmatpush2.msra.mxu0 0.0
    %1070 = vmatprep.mubr.f32.mxu0 0.0
    %1071 = vmatmul.mubr.f32.gmra.mxu0 %v1004
    %v1072 = vpop.f32.mrf.mxu0
    %v1073 = vadd.f32 0.0, %v1072
    %v1074 = vpop.f32.mrf.mxu0
    %1075 = vdwg.mxu0
    %v1077 = vrot.slane %v1073, 6
    %v1079 = vsel %vm183, %v999, %v1077
    %v1080 = vadd.f32 %v1079, %v184
    %v1081 = vxor.u32 %v1080, 2147483648
    %v1082 = vmul.f32 %v1081, 1.442695
    %v1083 = vpow.pop %v1082
    %v1084 = vadd.f32 %v1083, 1.0
    %v1085 = vrcp.pop %v1084
    %v1086 = vmul.f32 1.0, %v1085
    %v1087 = vtanh.pop %v1080
    %v1088 = vmul.f32 %v1086, %v912
    %1090 = vrot.lane.b32.xlu0 %v1087, 32
    %v1091 = vpop.permute.xlu0 %1090
    %v1093 = vmul.f32 %v1086, %v1091
    %1095 = vrot.lane.b32.xlu0 %v1093, 32
    %v1096 = vpop.permute.xlu0 %1095
    %v1098 = vadd.f32 %v1088, %v1096
    %v1099 = vtanh.pop %v1098
    %1101 = vrot.lane.b32.xlu0 %v1099, 32
    %v1102 = vpop.permute.xlu0 %1101
    %v1104 = vmul.f32 %v1086, %v1102
    %v1106 = vrot.slane %v1104, 6
    %1107 = vrot.lane.b32.xlu0 %v1106, 80
    %v1108 = vpop.permute.xlu0 %1107
    %v1110 = vsel %vm185, %v158, %v1108
    %v1111 = vsel %vm185, %v153, %v1108
    %v1113 = vrot.slane %v1110, 2
    %v1114 = vsel %vm188, %v1113, 0
    %1116 = vmatprep.subr.mxu0 0.0
    %1117 = vmatpush1.msra.mxu0 0.0
    %1118 = vmatprep.subr.mxu0 0.0
    %1119 = vmatpush1.msra.mxu0 0.0
    %1120 = vmatprep.subr.mxu0 0.0
    %1121 = vmatpush1.msra.mxu0 0.0
    %1122 = vmatprep.subr.mxu0 0.0
    %1123 = vmatpush1.msra.mxu0 0.0
    %1124 = vmatprep.subr.mxu0 0.0
    %1125 = vmatpush1.msra.mxu0 0.0
    %1126 = vmatprep.subr.mxu0 0.0
    %1127 = vmatpush1.msra.mxu0 0.0
    %1128 = vmatprep.subr.mxu0 0.0
    %1129 = vmatpush1.msra.mxu0 0.0
    %1130 = vmatprep.subr.mxu0 0.0
    %1131 = vmatpush1.msra.mxu0 0.0
    %1132 = vmatprep.subr.mxu0 0.0
    %1133 = vmatpush1.msra.mxu0 0.0
    %1134 = vmatprep.subr.mxu0 0.0
    %1135 = vmatpush1.msra.mxu0 0.0
    %1136 = vmatprep.subr.mxu0 0.0
    %1137 = vmatpush1.msra.mxu0 %v166
    %1138 = vmatprep.subr.mxu0 0.0
    %1139 = vmatpush1.msra.mxu0 %v165
    %1140 = vmatprep.subr.mxu0 0.0
    %1141 = vmatpush1.msra.mxu0 %v164
    %1142 = vmatprep.subr.mxu0 0.0
    %1143 = vmatpush1.msra.mxu0 %v163
    %1144 = vmatprep.subr.mxu0 0.0
    %1145 = vmatpush1.msra.mxu0 %v162
    %1146 = vmatprep.subr.mxu0 0.0
    %1147 = vmatpush1.msra.mxu0 %v161
    %1148 = vmatprep.subr.mxu0 0.0
    %1149 = vmatpush2.msra.mxu0 0.0
    %1150 = vmatprep.subr.mxu0 0.0
    %1151 = vmatpush2.msra.mxu0 0.0
    %1152 = vmatprep.subr.mxu0 0.0
    %1153 = vmatpush2.msra.mxu0 0.0
    %1154 = vmatprep.subr.mxu0 0.0
    %1155 = vmatpush2.msra.mxu0 0.0
    %1156 = vmatprep.subr.mxu0 0.0
    %1157 = vmatpush2.msra.mxu0 0.0
    %1158 = vmatprep.subr.mxu0 0.0
    %1159 = vmatpush2.msra.mxu0 0.0
    %1160 = vmatprep.subr.mxu0 0.0
    %1161 = vmatpush2.msra.mxu0 0.0
    %1162 = vmatprep.subr.mxu0 0.0
    %1163 = vmatpush2.msra.mxu0 0.0
    %1164 = vmatprep.subr.mxu0 0.0
    %1165 = vmatpush2.msra.mxu0 0.0
    %1166 = vmatprep.subr.mxu0 0.0
    %1167 = vmatpush2.msra.mxu0 0.0
    %1168 = vmatprep.subr.mxu0 0.0
    %1169 = vmatpush2.msra.mxu0 0.0
    %1170 = vmatprep.subr.mxu0 0.0
    %1171 = vmatpush2.msra.mxu0 0.0
    %1172 = vmatprep.subr.mxu0 0.0
    %1173 = vmatpush2.msra.mxu0 0.0
    %1174 = vmatprep.subr.mxu0 0.0
    %1175 = vmatpush2.msra.mxu0 0.0
    %1176 = vmatprep.subr.mxu0 0.0
    %1177 = vmatpush2.msra.mxu0 0.0
    %1178 = vmatprep.subr.mxu0 0.0
    %1179 = vmatpush2.msra.mxu0 0.0
    %1180 = vmatprep.mubr.f32.mxu0 0.0
    %1181 = vmatmul.mubr.f32.gmra.mxu0 %v1114
    %v1182 = vpop.f32.mrf.mxu0
    %v1183 = vadd.f32 0.0, %v1182
    %v1184 = vpop.f32.mrf.mxu0
    %1185 = vdwg.mxu0
    %v1187 = vrot.slane %v1111, 4
    %v1188 = vsel %vm188, %v1187, 0
    %1190 = vmatprep.subr.mxu0 0.0
    %1191 = vmatpush1.msra.mxu0 0.0
    %1192 = vmatprep.subr.mxu0 0.0
    %1193 = vmatpush1.msra.mxu0 0.0
    %1194 = vmatprep.subr.mxu0 0.0
    %1195 = vmatpush1.msra.mxu0 0.0
    %1196 = vmatprep.subr.mxu0 0.0
    %1197 = vmatpush1.msra.mxu0 0.0
    %1198 = vmatprep.subr.mxu0 0.0
    %1199 = vmatpush1.msra.mxu0 0.0
    %1200 = vmatprep.subr.mxu0 0.0
    %1201 = vmatpush1.msra.mxu0 0.0
    %1202 = vmatprep.subr.mxu0 0.0
    %1203 = vmatpush1.msra.mxu0 0.0
    %1204 = vmatprep.subr.mxu0 0.0
    %1205 = vmatpush1.msra.mxu0 0.0
    %1206 = vmatprep.subr.mxu0 0.0
    %1207 = vmatpush1.msra.mxu0 0.0
    %1208 = vmatprep.subr.mxu0 0.0
    %1209 = vmatpush1.msra.mxu0 0.0
    %1210 = vmatprep.subr.mxu0 0.0
    %1211 = vmatpush1.msra.mxu0 %v172
    %1212 = vmatprep.subr.mxu0 0.0
    %1213 = vmatpush1.msra.mxu0 %v171
    %1214 = vmatprep.subr.mxu0 0.0
    %1215 = vmatpush1.msra.mxu0 %v170
    %1216 = vmatprep.subr.mxu0 0.0
    %1217 = vmatpush1.msra.mxu0 %v169
    %1218 = vmatprep.subr.mxu0 0.0
    %1219 = vmatpush1.msra.mxu0 %v168
    %1220 = vmatprep.subr.mxu0 0.0
    %1221 = vmatpush1.msra.mxu0 %v167
    %1222 = vmatprep.subr.mxu0 0.0
    %1223 = vmatpush2.msra.mxu0 0.0
    %1224 = vmatprep.subr.mxu0 0.0
    %1225 = vmatpush2.msra.mxu0 0.0
    %1226 = vmatprep.subr.mxu0 0.0
    %1227 = vmatpush2.msra.mxu0 0.0
    %1228 = vmatprep.subr.mxu0 0.0
    %1229 = vmatpush2.msra.mxu0 0.0
    %1230 = vmatprep.subr.mxu0 0.0
    %1231 = vmatpush2.msra.mxu0 0.0
    %1232 = vmatprep.subr.mxu0 0.0
    %1233 = vmatpush2.msra.mxu0 0.0
    %1234 = vmatprep.subr.mxu0 0.0
    %1235 = vmatpush2.msra.mxu0 0.0
    %1236 = vmatprep.subr.mxu0 0.0
    %1237 = vmatpush2.msra.mxu0 0.0
    %1238 = vmatprep.subr.mxu0 0.0
    %1239 = vmatpush2.msra.mxu0 0.0
    %1240 = vmatprep.subr.mxu0 0.0
    %1241 = vmatpush2.msra.mxu0 0.0
    %1242 = vmatprep.subr.mxu0 0.0
    %1243 = vmatpush2.msra.mxu0 0.0
    %1244 = vmatprep.subr.mxu0 0.0
    %1245 = vmatpush2.msra.mxu0 0.0
    %1246 = vmatprep.subr.mxu0 0.0
    %1247 = vmatpush2.msra.mxu0 0.0
    %1248 = vmatprep.subr.mxu0 0.0
    %1249 = vmatpush2.msra.mxu0 0.0
    %1250 = vmatprep.subr.mxu0 0.0
    %1251 = vmatpush2.msra.mxu0 0.0
    %1252 = vmatprep.subr.mxu0 0.0
    %1253 = vmatpush2.msra.mxu0 0.0
    %1254 = vmatprep.mubr.f32.mxu0 0.0
    %1255 = vmatmul.mubr.f32.gmra.mxu0 %v1188
    %v1256 = vpop.f32.mrf.mxu0
    %v1257 = vadd.f32 0.0, %v1256
    %v1258 = vpop.f32.mrf.mxu0
    %1259 = vdwg.mxu0
    %v1261 = vrot.slane %v1257, 6
    %v1263 = vsel %vm183, %v1183, %v1261
    %v1264 = vadd.f32 %v1263, %v184
    %v1265 = vxor.u32 %v1264, 2147483648
    %v1266 = vmul.f32 %v1265, 1.442695
    %v1267 = vpow.pop %v1266
    %v1268 = vadd.f32 %v1267, 1.0
    %v1269 = vrcp.pop %v1268
    %v1270 = vmul.f32 1.0, %v1269
    %v1271 = vtanh.pop %v1264
    %v1272 = vmul.f32 %v1270, %v1098
    %1274 = vrot.lane.b32.xlu0 %v1271, 32
    %v1275 = vpop.permute.xlu0 %1274
    %v1277 = vmul.f32 %v1270, %v1275
    %1279 = vrot.lane.b32.xlu0 %v1277, 32
    %v1280 = vpop.permute.xlu0 %1279
    %v1282 = vadd.f32 %v1272, %v1280
    %v1283 = vtanh.pop %v1282
    %1285 = vrot.lane.b32.xlu0 %v1283, 32
    %v1286 = vpop.permute.xlu0 %1285
    %v1288 = vmul.f32 %v1270, %v1286
    %v1290 = vrot.slane %v1288, 4
    %1291 = vrot.lane.b32.xlu0 %v1290, 80
    %v1292 = vpop.permute.xlu0 %1291
    %v1294 = vsel %vm185, %v158, %v1292
    %1295 = vrot.lane.b32.xlu0 %v1288, 80
    %v1296 = vpop.permute.xlu0 %1295
    %v1298 = vsel %vm185, %v153, %v1296
    %v1300 = vrot.slane %v1294, 4
    %v1301 = vsel %vm188, %v1300, 0
    %1303 = vmatprep.subr.mxu0 0.0
    %1304 = vmatpush1.msra.mxu0 0.0
    %1305 = vmatprep.subr.mxu0 0.0
    %1306 = vmatpush1.msra.mxu0 0.0
    %1307 = vmatprep.subr.mxu0 0.0
    %1308 = vmatpush1.msra.mxu0 0.0
    %1309 = vmatprep.subr.mxu0 0.0
    %1310 = vmatpush1.msra.mxu0 0.0
    %1311 = vmatprep.subr.mxu0 0.0
    %1312 = vmatpush1.msra.mxu0 0.0
    %1313 = vmatprep.subr.mxu0 0.0
    %1314 = vmatpush1.msra.mxu0 0.0
    %1315 = vmatprep.subr.mxu0 0.0
    %1316 = vmatpush1.msra.mxu0 0.0
    %1317 = vmatprep.subr.mxu0 0.0
    %1318 = vmatpush1.msra.mxu0 0.0
    %1319 = vmatprep.subr.mxu0 0.0
    %1320 = vmatpush1.msra.mxu0 0.0
    %1321 = vmatprep.subr.mxu0 0.0
    %1322 = vmatpush1.msra.mxu0 0.0
    %1323 = vmatprep.subr.mxu0 0.0
    %1324 = vmatpush1.msra.mxu0 %v166
    %1325 = vmatprep.subr.mxu0 0.0
    %1326 = vmatpush1.msra.mxu0 %v165
    %1327 = vmatprep.subr.mxu0 0.0
    %1328 = vmatpush1.msra.mxu0 %v164
    %1329 = vmatprep.subr.mxu0 0.0
    %1330 = vmatpush1.msra.mxu0 %v163
    %1331 = vmatprep.subr.mxu0 0.0
    %1332 = vmatpush1.msra.mxu0 %v162
    %1333 = vmatprep.subr.mxu0 0.0
    %1334 = vmatpush1.msra.mxu0 %v161
    %1335 = vmatprep.subr.mxu0 0.0
    %1336 = vmatpush2.msra.mxu0 0.0
    %1337 = vmatprep.subr.mxu0 0.0
    %1338 = vmatpush2.msra.mxu0 0.0
    %1339 = vmatprep.subr.mxu0 0.0
    %1340 = vmatpush2.msra.mxu0 0.0
    %1341 = vmatprep.subr.mxu0 0.0
    %1342 = vmatpush2.msra.mxu0 0.0
    %1343 = vmatprep.subr.mxu0 0.0
    %1344 = vmatpush2.msra.mxu0 0.0
    %1345 = vmatprep.subr.mxu0 0.0
    %1346 = vmatpush2.msra.mxu0 0.0
    %1347 = vmatprep.subr.mxu0 0.0
    %1348 = vmatpush2.msra.mxu0 0.0
    %1349 = vmatprep.subr.mxu0 0.0
    %1350 = vmatpush2.msra.mxu0 0.0
    %1351 = vmatprep.subr.mxu0 0.0
    %1352 = vmatpush2.msra.mxu0 0.0
    %1353 = vmatprep.subr.mxu0 0.0
    %1354 = vmatpush2.msra.mxu0 0.0
    %1355 = vmatprep.subr.mxu0 0.0
    %1356 = vmatpush2.msra.mxu0 0.0
    %1357 = vmatprep.subr.mxu0 0.0
    %1358 = vmatpush2.msra.mxu0 0.0
    %1359 = vmatprep.subr.mxu0 0.0
    %1360 = vmatpush2.msra.mxu0 0.0
    %1361 = vmatprep.subr.mxu0 0.0
    %1362 = vmatpush2.msra.mxu0 0.0
    %1363 = vmatprep.subr.mxu0 0.0
    %1364 = vmatpush2.msra.mxu0 0.0
    %1365 = vmatprep.subr.mxu0 0.0
    %1366 = vmatpush2.msra.mxu0 0.0
    %1367 = vmatprep.mubr.f32.mxu0 0.0
    %1368 = vmatmul.mubr.f32.gmra.mxu0 %v1301
    %v1369 = vpop.f32.mrf.mxu0
    %v1370 = vadd.f32 0.0, %v1369
    %v1371 = vpop.f32.mrf.mxu0
    %1372 = vdwg.mxu0
    %v1374 = vrot.slane %v1298, 2
    %v1375 = vsel %vm188, %v1374, 0
    %1377 = vmatprep.subr.mxu0 0.0
    %1378 = vmatpush1.msra.mxu0 0.0
    %1379 = vmatprep.subr.mxu0 0.0
    %1380 = vmatpush1.msra.mxu0 0.0
    %1381 = vmatprep.subr.mxu0 0.0
    %1382 = vmatpush1.msra.mxu0 0.0
    %1383 = vmatprep.subr.mxu0 0.0
    %1384 = vmatpush1.msra.mxu0 0.0
    %1385 = vmatprep.subr.mxu0 0.0
    %1386 = vmatpush1.msra.mxu0 0.0
    %1387 = vmatprep.subr.mxu0 0.0
    %1388 = vmatpush1.msra.mxu0 0.0
    %1389 = vmatprep.subr.mxu0 0.0
    %1390 = vmatpush1.msra.mxu0 0.0
    %1391 = vmatprep.subr.mxu0 0.0
    %1392 = vmatpush1.msra.mxu0 0.0
    %1393 = vmatprep.subr.mxu0 0.0
    %1394 = vmatpush1.msra.mxu0 0.0
    %1395 = vmatprep.subr.mxu0 0.0
    %1396 = vmatpush1.msra.mxu0 0.0
    %1397 = vmatprep.subr.mxu0 0.0
    %1398 = vmatpush1.msra.mxu0 %v172
    %1399 = vmatprep.subr.mxu0 0.0
    %1400 = vmatpush1.msra.mxu0 %v171
    %1401 = vmatprep.subr.mxu0 0.0
    %1402 = vmatpush1.msra.mxu0 %v170
    %1403 = vmatprep.subr.mxu0 0.0
    %1404 = vmatpush1.msra.mxu0 %v169
    %1405 = vmatprep.subr.mxu0 0.0
    %1406 = vmatpush1.msra.mxu0 %v168
    %1407 = vmatprep.subr.mxu0 0.0
    %1408 = vmatpush1.msra.mxu0 %v167
    %1409 = vmatprep.subr.mxu0 0.0
    %1410 = vmatpush2.msra.mxu0 0.0
    %1411 = vmatprep.subr.mxu0 0.0
    %1412 = vmatpush2.msra.mxu0 0.0
    %1413 = vmatprep.subr.mxu0 0.0
    %1414 = vmatpush2.msra.mxu0 0.0
    %1415 = vmatprep.subr.mxu0 0.0
    %1416 = vmatpush2.msra.mxu0 0.0
    %1417 = vmatprep.subr.mxu0 0.0
    %1418 = vmatpush2.msra.mxu0 0.0
    %1419 = vmatprep.subr.mxu0 0.0
    %1420 = vmatpush2.msra.mxu0 0.0
    %1421 = vmatprep.subr.mxu0 0.0
    %1422 = vmatpush2.msra.mxu0 0.0
    %1423 = vmatprep.subr.mxu0 0.0
    %1424 = vmatpush2.msra.mxu0 0.0
    %1425 = vmatprep.subr.mxu0 0.0
    %1426 = vmatpush2.msra.mxu0 0.0
    %1427 = vmatprep.subr.mxu0 0.0
    %1428 = vmatpush2.msra.mxu0 0.0
    %1429 = vmatprep.subr.mxu0 0.0
    %1430 = vmatpush2.msra.mxu0 0.0
    %1431 = vmatprep.subr.mxu0 0.0
    %1432 = vmatpush2.msra.mxu0 0.0
    %1433 = vmatprep.subr.mxu0 0.0
    %1434 = vmatpush2.msra.mxu0 0.0
    %1435 = vmatprep.subr.mxu0 0.0
    %1436 = vmatpush2.msra.mxu0 0.0
    %1437 = vmatprep.subr.mxu0 0.0
    %1438 = vmatpush2.msra.mxu0 0.0
    %1439 = vmatprep.subr.mxu0 0.0
    %1440 = vmatpush2.msra.mxu0 0.0
    %1441 = vmatprep.mubr.f32.mxu0 0.0
    %1442 = vmatmul.mubr.f32.gmra.mxu0 %v1375
    %v1443 = vpop.f32.mrf.mxu0
    %v1444 = vadd.f32 0.0, %v1443
    %v1445 = vpop.f32.mrf.mxu0
    %1446 = vdwg.mxu0
    %v1448 = vrot.slane %v1444, 6
    %v1450 = vsel %vm183, %v1370, %v1448
    %v1451 = vadd.f32 %v1450, %v184
    %v1452 = vxor.u32 %v1451, 2147483648
    %v1453 = vmul.f32 %v1452, 1.442695
    %v1454 = vpow.pop %v1453
    %v1455 = vadd.f32 %v1454, 1.0
    %v1456 = vrcp.pop %v1455
    %v1457 = vmul.f32 1.0, %v1456
    %v1458 = vtanh.pop %v1451
    %v1459 = vmul.f32 %v1457, %v1282
    %1461 = vrot.lane.b32.xlu0 %v1458, 32
    %v1462 = vpop.permute.xlu0 %1461
    %v1464 = vmul.f32 %v1457, %v1462
    %1466 = vrot.lane.b32.xlu0 %v1464, 32
    %v1467 = vpop.permute.xlu0 %1466
    %v1469 = vadd.f32 %v1459, %v1467
    %v1470 = vtanh.pop %v1469
    %1472 = vrot.lane.b32.xlu0 %v1470, 32
    %v1473 = vpop.permute.xlu0 %1472
    %v1475 = vmul.f32 %v1457, %v1473
    %v1477 = vrot.slane %v1475, 2
    %1478 = vrot.lane.b32.xlu0 %v1477, 80
    %v1479 = vpop.permute.xlu0 %1478
    %v1481 = vsel %vm185, %v158, %v1479
    %v1482 = vsel %vm185, %v153, %v1479
    %v1484 = vrot.slane %v1481, 6
    %v1485 = vsel %vm188, %v1484, 0
    %1487 = vmatprep.subr.mxu0 0.0
    %1488 = vmatpush1.msra.mxu0 0.0
    %1489 = vmatprep.subr.mxu0 0.0
    %1490 = vmatpush1.msra.mxu0 0.0
    %1491 = vmatprep.subr.mxu0 0.0
    %1492 = vmatpush1.msra.mxu0 0.0
    %1493 = vmatprep.subr.mxu0 0.0
    %1494 = vmatpush1.msra.mxu0 0.0
    %1495 = vmatprep.subr.mxu0 0.0
    %1496 = vmatpush1.msra.mxu0 0.0
    %1497 = vmatprep.subr.mxu0 0.0
    %1498 = vmatpush1.msra.mxu0 0.0
    %1499 = vmatprep.subr.mxu0 0.0
    %1500 = vmatpush1.msra.mxu0 0.0
    %1501 = vmatprep.subr.mxu0 0.0
    %1502 = vmatpush1.msra.mxu0 0.0
    %1503 = vmatprep.subr.mxu0 0.0
    %1504 = vmatpush1.msra.mxu0 0.0
    %1505 = vmatprep.subr.mxu0 0.0
    %1506 = vmatpush1.msra.mxu0 0.0
    %1507 = vmatprep.subr.mxu0 0.0
    %1508 = vmatpush1.msra.mxu0 %v166
    %1509 = vmatprep.subr.mxu0 0.0
    %1510 = vmatpush1.msra.mxu0 %v165
    %1511 = vmatprep.subr.mxu0 0.0
    %1512 = vmatpush1.msra.mxu0 %v164
    %1513 = vmatprep.subr.mxu0 0.0
    %1514 = vmatpush1.msra.mxu0 %v163
    %1515 = vmatprep.subr.mxu0 0.0
    %1516 = vmatpush1.msra.mxu0 %v162
    %1517 = vmatprep.subr.mxu0 0.0
    %1518 = vmatpush1.msra.mxu0 %v161
    %1519 = vmatprep.subr.mxu0 0.0
    %1520 = vmatpush2.msra.mxu0 0.0
    %1521 = vmatprep.subr.mxu0 0.0
    %1522 = vmatpush2.msra.mxu0 0.0
    %1523 = vmatprep.subr.mxu0 0.0
    %1524 = vmatpush2.msra.mxu0 0.0
    %1525 = vmatprep.subr.mxu0 0.0
    %1526 = vmatpush2.msra.mxu0 0.0
    %1527 = vmatprep.subr.mxu0 0.0
    %1528 = vmatpush2.msra.mxu0 0.0
    %1529 = vmatprep.subr.mxu0 0.0
    %1530 = vmatpush2.msra.mxu0 0.0
    %1531 = vmatprep.subr.mxu0 0.0
    %1532 = vmatpush2.msra.mxu0 0.0
    %1533 = vmatprep.subr.mxu0 0.0
    %1534 = vmatpush2.msra.mxu0 0.0
    %1535 = vmatprep.subr.mxu0 0.0
    %1536 = vmatpush2.msra.mxu0 0.0
    %1537 = vmatprep.subr.mxu0 0.0
    %1538 = vmatpush2.msra.mxu0 0.0
    %1539 = vmatprep.subr.mxu0 0.0
    %1540 = vmatpush2.msra.mxu0 0.0
    %1541 = vmatprep.subr.mxu0 0.0
    %1542 = vmatpush2.msra.mxu0 0.0
    %1543 = vmatprep.subr.mxu0 0.0
    %1544 = vmatpush2.msra.mxu0 0.0
    %1545 = vmatprep.subr.mxu0 0.0
    %1546 = vmatpush2.msra.mxu0 0.0
    %1547 = vmatprep.subr.mxu0 0.0
    %1548 = vmatpush2.msra.mxu0 0.0
    %1549 = vmatprep.subr.mxu0 0.0
    %1550 = vmatpush2.msra.mxu0 0.0
    %1551 = vmatprep.mubr.f32.mxu0 0.0
    %1552 = vmatmul.mubr.f32.gmra.mxu0 %v1485
    %v1553 = vpop.f32.mrf.mxu0
    %v1554 = vadd.f32 0.0, %v1553
    %v1555 = vpop.f32.mrf.mxu0
    %1556 = vdwg.mxu0
    %v1558 = vsel %vm188, %v1482, 0
    %1560 = vmatprep.subr.mxu0 0.0
    %1561 = vmatpush1.msra.mxu0 0.0
    %1562 = vmatprep.subr.mxu0 0.0
    %1563 = vmatpush1.msra.mxu0 0.0
    %1564 = vmatprep.subr.mxu0 0.0
    %1565 = vmatpush1.msra.mxu0 0.0
    %1566 = vmatprep.subr.mxu0 0.0
    %1567 = vmatpush1.msra.mxu0 0.0
    %1568 = vmatprep.subr.mxu0 0.0
    %1569 = vmatpush1.msra.mxu0 0.0
    %1570 = vmatprep.subr.mxu0 0.0
    %1571 = vmatpush1.msra.mxu0 0.0
    %1572 = vmatprep.subr.mxu0 0.0
    %1573 = vmatpush1.msra.mxu0 0.0
    %1574 = vmatprep.subr.mxu0 0.0
    %1575 = vmatpush1.msra.mxu0 0.0
    %1576 = vmatprep.subr.mxu0 0.0
    %1577 = vmatpush1.msra.mxu0 0.0
    %1578 = vmatprep.subr.mxu0 0.0
    %1579 = vmatpush1.msra.mxu0 0.0
    %1580 = vmatprep.subr.mxu0 0.0
    %1581 = vmatpush1.msra.mxu0 %v172
    %1582 = vmatprep.subr.mxu0 0.0
    %1583 = vmatpush1.msra.mxu0 %v171
    %1584 = vmatprep.subr.mxu0 0.0
    %1585 = vmatpush1.msra.mxu0 %v170
    %1586 = vmatprep.subr.mxu0 0.0
    %1587 = vmatpush1.msra.mxu0 %v169
    %1588 = vmatprep.subr.mxu0 0.0
    %1589 = vmatpush1.msra.mxu0 %v168
    %1590 = vmatprep.subr.mxu0 0.0
    %1591 = vmatpush1.msra.mxu0 %v167
    %1592 = vmatprep.subr.mxu0 0.0
    %1593 = vmatpush2.msra.mxu0 0.0
    %1594 = vmatprep.subr.mxu0 0.0
    %1595 = vmatpush2.msra.mxu0 0.0
    %1596 = vmatprep.subr.mxu0 0.0
    %1597 = vmatpush2.msra.mxu0 0.0
    %1598 = vmatprep.subr.mxu0 0.0
    %1599 = vmatpush2.msra.mxu0 0.0
    %1600 = vmatprep.subr.mxu0 0.0
    %1601 = vmatpush2.msra.mxu0 0.0
    %1602 = vmatprep.subr.mxu0 0.0
    %1603 = vmatpush2.msra.mxu0 0.0
    %1604 = vmatprep.subr.mxu0 0.0
    %1605 = vmatpush2.msra.mxu0 0.0
    %1606 = vmatprep.subr.mxu0 0.0
    %1607 = vmatpush2.msra.mxu0 0.0
    %1608 = vmatprep.subr.mxu0 0.0
    %1609 = vmatpush2.msra.mxu0 0.0
    %1610 = vmatprep.subr.mxu0 0.0
    %1611 = vmatpush2.msra.mxu0 0.0
    %1612 = vmatprep.subr.mxu0 0.0
    %1613 = vmatpush2.msra.mxu0 0.0
    %1614 = vmatprep.subr.mxu0 0.0
    %1615 = vmatpush2.msra.mxu0 0.0
    %1616 = vmatprep.subr.mxu0 0.0
    %1617 = vmatpush2.msra.mxu0 0.0
    %1618 = vmatprep.subr.mxu0 0.0
    %1619 = vmatpush2.msra.mxu0 0.0
    %1620 = vmatprep.subr.mxu0 0.0
    %1621 = vmatpush2.msra.mxu0 0.0
    %1622 = vmatprep.subr.mxu0 0.0
    %1623 = vmatpush2.msra.mxu0 0.0
    %1624 = vmatprep.mubr.f32.mxu0 0.0
    %1625 = vmatmul.mubr.f32.gmra.mxu0 %v1558
    %v1626 = vpop.f32.mrf.mxu0
    %v1627 = vadd.f32 0.0, %v1626
    %v1628 = vpop.f32.mrf.mxu0
    %1629 = vdwg.mxu0
    %v1631 = vrot.slane %v1627, 6
    %v1633 = vsel %vm183, %v1554, %v1631
    %v1634 = vadd.f32 %v1633, %v184
    %v1635 = vxor.u32 %v1634, 2147483648
    %v1636 = vmul.f32 %v1635, 1.442695
    %v1637 = vpow.pop %v1636
    %v1638 = vadd.f32 %v1637, 1.0
    %v1639 = vrcp.pop %v1638
    %v1640 = vmul.f32 1.0, %v1639
    %v1641 = vtanh.pop %v1634
    %v1642 = vmul.f32 %v1640, %v1469
    %1644 = vrot.lane.b32.xlu0 %v1641, 32
    %v1645 = vpop.permute.xlu0 %1644
    %v1647 = vmul.f32 %v1640, %v1645
    %1649 = vrot.lane.b32.xlu0 %v1647, 32
    %v1650 = vpop.permute.xlu0 %1649
    %v1652 = vadd.f32 %v1642, %v1650
    %v1653 = vtanh.pop %v1652
    %1655 = vrot.lane.b32.xlu0 %v1653, 32
    %v1656 = vpop.permute.xlu0 %1655
    %v1658 = vmul.f32 %v1640, %v1656
    %1659 = vrot.lane.b32.xlu0 %v364, 64
    %v1660 = vpop.permute.xlu0 %1659
    %v1663 = vrot.slane %v1658, 2
    %1664 = vrot.lane.b32.xlu0 %v1663, 96
    %v1665 = vpop.permute.xlu0 %1664
    %vm1667 = vcmask 261120
    %v1668 = vsel %vm1667, %v1660, %v1665
    %1669 = vrot.lane.b32.xlu0 %v548, 64
    %v1670 = vpop.permute.xlu0 %1669
    %1672 = vrot.lane.b32.xlu0 %v1477, 96
    %v1673 = vpop.permute.xlu0 %1672
    %v1675 = vsel %vm1667, %v1670, %v1673
    %1676 = vrot.lane.b32.xlu0 %v735, 64
    %v1677 = vpop.permute.xlu0 %1676
    %v1679 = vrot.slane %v1288, 2
    %1680 = vrot.lane.b32.xlu0 %v1679, 96
    %v1681 = vpop.permute.xlu0 %1680
    %v1683 = vsel %vm1667, %v1677, %v1681
    %1684 = vrot.lane.b32.xlu0 %v918, 64
    %v1685 = vpop.permute.xlu0 %1684
    %v1687 = vrot.slane %v1104, 2
    %1688 = vrot.lane.b32.xlu0 %v1687, 96
    %v1689 = vpop.permute.xlu0 %1688
    %v1691 = vsel %vm1667, %v1685, %v1689
    %1692 = vrot.lane.b32.xlu0 %v1104, 64
    %v1693 = vpop.permute.xlu0 %1692
    %v1695 = vrot.slane %v918, 2
    %1696 = vrot.lane.b32.xlu0 %v1695, 96
    %v1697 = vpop.permute.xlu0 %1696
    %v1699 = vsel %vm1667, %v1693, %v1697
    %1700 = vrot.lane.b32.xlu0 %v1288, 64
    %v1701 = vpop.permute.xlu0 %1700
    %1703 = vrot.lane.b32.xlu0 %v737, 96
    %v1704 = vpop.permute.xlu0 %1703
    %v1706 = vsel %vm1667, %v1701, %v1704
    %1707 = vrot.lane.b32.xlu0 %v1475, 64
    %v1708 = vpop.permute.xlu0 %1707
    %v1710 = vrot.slane %v548, 2
    %1711 = vrot.lane.b32.xlu0 %v1710, 96
    %v1712 = vpop.permute.xlu0 %1711
    %v1714 = vsel %vm1667, %v1708, %v1712
    %1715 = vrot.lane.b32.xlu0 %v1658, 64
    %v1716 = vpop.permute.xlu0 %1715
    %v1718 = vrot.slane %v364, 2
    %1719 = vrot.lane.b32.xlu0 %v1718, 96
    %v1720 = vpop.permute.xlu0 %1719
    %v1722 = vsel %vm1667, %v1716, %v1720
    %v1724 = vrot.slane %v1675, 6
    %v1727 = vrot.slane %v1683, 4
    %v1730 = vrot.slane %v1691, 2
    %v1733 = vrot.slane %v1706, 6
    %v1736 = vrot.slane %v1714, 4
    %v1739 = vrot.slane %v1722, 2
    %v1741 = vsel %vm183, %v1668, %v1724
    %v1742 = vsel %vm82, %v1741, %v1727
    %vm1743 = vcmask 1045504
    %v1744 = vsel %vm1743, %v1742, %v1730
    %v1745 = vsel %vm183, %v1699, %v1733
    %v1746 = vsel %vm82, %v1745, %v1736
    %v1747 = vsel %vm1743, %v1746, %v1739
    %v1748 = vld [vmem:[%s5] sm:$0xff]
    %v1749 = vld [vmem:[%s5 + $0x8] sm:$0xff]
    %v1750 = vld [vmem:[%s5 + $0x10] sm:$0xff]
    %v1751 = vld [vmem:[%s5 + $0x18] sm:$0xff]
    %v1752 = vld [vmem:[%s5 + $0x20] sm:$0xff]
    %v1753 = vld [vmem:[%s5 + $0x28] sm:$0xff]
    %v1754 = vld [vmem:[%s5 + $0x30] sm:$0xff]
    %v1755 = vld [vmem:[%s5 + $0x38] sm:$0xff]
    %v1756 = vld [vmem:[%s6] sm:$0x1]
    %v1758 = vlaneseq
    %v1759 = vshrl.u32 %v1758, 7
    %v1760 = vsub.s32 0, %v1759
    %v1761 = vrot.slane %v1756, %v1760
    %vm1763 = vcmask 523264
    %v1765 = vsel %vm1763, %v1744, 0
    %v1768 = vsel %vm1763, %v1747, 0
    %1770 = vmatprep.subr.mxu0 0.0
    %1771 = vmatpush1.msra.mxu0 0.0
    %1772 = vmatprep.subr.mxu0 0.0
    %1773 = vmatpush1.msra.mxu0 0.0
    %1774 = vmatprep.subr.mxu0 0.0
    %1775 = vmatpush1.msra.mxu0 0.0
    %1776 = vmatprep.subr.mxu0 0.0
    %1777 = vmatpush1.msra.mxu0 0.0
    %1778 = vmatprep.subr.mxu0 0.0
    %1779 = vmatpush1.msra.mxu0 0.0
    %1780 = vmatprep.subr.mxu0 0.0
    %1781 = vmatpush1.msra.mxu0 0.0
    %1782 = vmatprep.subr.mxu0 0.0
    %1783 = vmatpush1.msra.mxu0 0.0
    %1784 = vmatprep.subr.mxu0 0.0
    %1785 = vmatpush1.msra.mxu0 0.0
    %1786 = vmatprep.subr.mxu0 0.0
    %1787 = vmatpush1.msra.mxu0 %v1755
    %1788 = vmatprep.subr.mxu0 0.0
    %1789 = vmatpush1.msra.mxu0 %v1754
    %1790 = vmatprep.subr.mxu0 0.0
    %1791 = vmatpush1.msra.mxu0 %v1753
    %1792 = vmatprep.subr.mxu0 0.0
    %1793 = vmatpush1.msra.mxu0 %v1752
    %1794 = vmatprep.subr.mxu0 0.0
    %1795 = vmatpush1.msra.mxu0 %v1751
    %1796 = vmatprep.subr.mxu0 0.0
    %1797 = vmatpush1.msra.mxu0 %v1750
    %1798 = vmatprep.subr.mxu0 0.0
    %1799 = vmatpush1.msra.mxu0 %v1749
    %1800 = vmatprep.subr.mxu0 0.0
    %1801 = vmatpush1.msra.mxu0 %v1748
    %1802 = vmatprep.subr.mxu0 0.0
    %1803 = vmatpush2.msra.mxu0 0.0
    %1804 = vmatprep.subr.mxu0 0.0
    %1805 = vmatpush2.msra.mxu0 0.0
    %1806 = vmatprep.subr.mxu0 0.0
    %1807 = vmatpush2.msra.mxu0 0.0
    %1808 = vmatprep.subr.mxu0 0.0
    %1809 = vmatpush2.msra.mxu0 0.0
    %1810 = vmatprep.subr.mxu0 0.0
    %1811 = vmatpush2.msra.mxu0 0.0
    %1812 = vmatprep.subr.mxu0 0.0
    %1813 = vmatpush2.msra.mxu0 0.0
    %1814 = vmatprep.subr.mxu0 0.0
    %1815 = vmatpush2.msra.mxu0 0.0
    %1816 = vmatprep.subr.mxu0 0.0
    %1817 = vmatpush2.msra.mxu0 0.0
    %1818 = vmatprep.subr.mxu0 0.0
    %1819 = vmatpush2.msra.mxu0 0.0
    %1820 = vmatprep.subr.mxu0 0.0
    %1821 = vmatpush2.msra.mxu0 0.0
    %1822 = vmatprep.subr.mxu0 0.0
    %1823 = vmatpush2.msra.mxu0 0.0
    %1824 = vmatprep.subr.mxu0 0.0
    %1825 = vmatpush2.msra.mxu0 0.0
    %1826 = vmatprep.subr.mxu0 0.0
    %1827 = vmatpush2.msra.mxu0 0.0
    %1828 = vmatprep.subr.mxu0 0.0
    %1829 = vmatpush2.msra.mxu0 0.0
    %1830 = vmatprep.subr.mxu0 0.0
    %1831 = vmatpush2.msra.mxu0 0.0
    %1832 = vmatprep.subr.mxu0 0.0
    %1833 = vmatpush2.msra.mxu0 0.0
    %1834 = vmatprep.mubr.f32.mxu0 0.0
    %1835 = vmatmul.mubr.f32.gmra.mxu0 %v1765
    %v1836 = vpop.f32.mrf.mxu0
    %v1837 = vadd.f32 %v1761, %v1836
    %v1838 = vpop.f32.mrf.mxu0
    %1839 = vmatprep.mubr.f32.mxu0 0.0
    %1840 = vmatmul.mubr.f32.gmra.mxu0 %v1768
    %v1841 = vpop.f32.mrf.mxu0
    %v1842 = vadd.f32 %v1761, %v1841
    %v1843 = vpop.f32.mrf.mxu0
    %1844 = vdwg.mxu0
    %1845 = vst [vmem:[%s7] sm:$0xff] %v1837
    %1846 = vst [vmem:[%s7 + $0x8] sm:$0xff] %v1842
    %vm1847 = vcmp.lt.s32.totalorder %v59, 5
    %v1848 = vsel %vm1847, %v1837, -3e+38
    %v1849 = vsel %vm1847, %v1842, -3e+38
    %1850 = vmax.xlane.f32.xlu0 %v1848
    %v1851 = vpop.xlane.xlu0 %1850
    %1852 = vmax.xlane.f32.xlu0 %v1849
    %v1853 = vpop.xlane.xlu0 %1852
    %vm1854 = vcmp.eq.f32.partialorder %v1848, %v1851
    %vm1855 = vcmp.eq.f32.partialorder %v1849, %v1853
    %vm1856 = vmand %vm1847, %vm1854
    %vm1857 = vmand %vm1847, %vm1855
    %v1858 = vsel %vm1856, %v59, 128
    %v1859 = vsel %vm1857, %v59, 128
    %v1860 = vand.u32 %v1858, 65535
    %v1861 = vshra.s32 %v1858, 16
    %v1862 = vcvt.s32.f32 %v1860
    %v1863 = vcvt.s32.f32 %v1861
    %1864 = vmin.xlane.f32.xlu0 %v1863
    %v1865 = vpop.xlane.xlu0 %1864
    %vm1866 = vcmp.eq.f32.partialorder %v1863, %v1865
    %v1867 = vsel %vm1866, %v1862, inf
    %1868 = vmin.xlane.f32.xlu0 %v1867
    %v1869 = vpop.xlane.xlu0 %1868
    %v1870 = vcvt.f32.s32 %v1869
    %v1871 = vcvt.f32.s32 %v1865
    %v1872 = vshll.u32 %v1871, 16
    %v1873 = vadd.s32 %v1872, %v1870
    %v1874 = vand.u32 %v1859, 65535
    %v1875 = vshra.s32 %v1859, 16
    %v1876 = vcvt.s32.f32 %v1874
    %v1877 = vcvt.s32.f32 %v1875
    %1878 = vmin.xlane.f32.xlu0 %v1877
    %v1879 = vpop.xlane.xlu0 %1878
    %vm1880 = vcmp.eq.f32.partialorder %v1877, %v1879
    %v1881 = vsel %vm1880, %v1876, inf
    %1882 = vmin.xlane.f32.xlu0 %v1881
    %v1883 = vpop.xlane.xlu0 %1882
    %v1884 = vcvt.f32.s32 %v1883
    %v1885 = vcvt.f32.s32 %v1879
    %v1886 = vshll.u32 %v1885, 16
    %v1887 = vadd.s32 %v1886, %v1884
    %1888 = vst [vmem:[%s8] sm:$0xff] %v1873
    %1889 = vst [vmem:[%s8 + $0x8] sm:$0xff] %v1887
    // Predicated region
    $region38: #{net_forward.1} parent=1 // pred_check
      _
    $region39: #{net_forward.1} parent=1 // pred_check_branch
      %1891 = sbr.rel (0) target = $region41
    $region40: #{net_forward.1} parent=1 // pred_region
      _
    $region41: #{net_forward.1} parent=1 // pred_fallthru
      _
    // Predicated region
    $region42: #{net_forward.1} parent=1 // pred_check
      _
    $region43: #{net_forward.1} parent=1 // pred_check_branch
      %1893 = sbr.rel (0) target = $region45
    $region44: #{net_forward.1} parent=1 // pred_region
      _
    $region45: #{net_forward.1} parent=1 // pred_fallthru
      _
    // Predicated region
    $region46: #{net_forward.1} parent=1 // pred_check
      _
    $region47: #{net_forward.1} parent=1 // pred_check_branch
      %1895 = sbr.rel (0) target = $region49
    $region48: #{net_forward.1} parent=1 // pred_region
      _
    $region49: #{net_forward.1} parent=1 // pred_fallthru
      _
    // Predicated region
    $region50: #{net_forward.1} parent=1 // pred_check
      _
    $region51: #{net_forward.1} parent=1 // pred_check_branch
      %1897 = sbr.rel (0) target = $region53
    $region52: #{net_forward.1} parent=1 // pred_region
      _
    $region53: #{net_forward.1} parent=1 // pred_fallthru
      _
    %1898 = vsyncpa [#allocation3], 1
    %1899 = vsyncpa [#allocation5], 1

</llo_original>
